<compile_context>
chip_gen: v7x
topology: tpu7x:2x2x1
jax: 0.10.0
libtpu: 0.0.40
codegen_flags: <defaults>
</compile_context>

<pallas_src>
import functools

import jax
import jax.numpy as jnp
from jax import lax
from jax.experimental import pallas as pl
from jax.experimental.pallas import tpu as pltpu


# Tile budgets (f32).  Double-buffered inputs + acc ~= 5-6 MiB: fits the scoped
# VMEM on every generation (v5e/v6e 128 MiB phys, v7x 64 MiB phys).  On
# v5e/v6e tk/tn can be pushed to 1024 with a larger vmem_limit_bytes.
_TM, _TN, _TK = 256, 512, 512
_VMEM_LIMIT = 32 * 1024 * 1024


def _round_up(x, m):
    return ((x + m - 1) // m) * m


def _tile(dim, pref):
    """(tile, padded_extent).  dim<=pref -> block equals the full array dim
    (always a legal TPU block); otherwise pref (multiple of 8/128) + padding."""
    if dim <= pref:
        return dim, dim
    return pref, _round_up(dim, pref)


# ----------------------- fused / tiled linear kernel ------------------------

def _fused_linear_kernel(*refs, activation, fuse_ln, fuse_res, nk):
    it = iter(refs)
    x_ref, w_ref, b_ref = next(it), next(it), next(it)
    g_ref = next(it) if fuse_ln else None
    gb_ref = next(it) if fuse_ln else None
    r_ref = next(it) if fuse_res else None
    o_ref, acc_ref = next(it), next(it)

    @pl.when(pl.program_id(2) == 0)
    def _():
        acc_ref[...] = jnp.zeros_like(acc_ref)

    x = x_ref[...]
    if fuse_ln:  # LayerNorm prologue (full K row present; stats in f32)
        mu = jnp.mean(x, axis=-1, keepdims=True)
        var = jnp.mean(jnp.square(x - mu), axis=-1, keepdims=True)
        x = (x - mu) * lax.rsqrt(var + 1e-5)        # PyTorch LayerNorm eps
        x = x * g_ref[...] + gb_ref[...]

    acc_ref[...] += jnp.dot(x, w_ref[...], preferred_element_type=jnp.float32)

    @pl.when(pl.program_id(2) == nk - 1)  # bias / act / residual only once
    def _():
        y = acc_ref[...] + b_ref[...]
        if activation == "relu":
            y = jnp.maximum(y, 0.0)
        if fuse_res:
            y = y + r_ref[...]
        o_ref[...] = y.astype(o_ref.dtype)


def fused_linear(x, w, b, *, ln_g=None, ln_b=None, residual=None,
                 activation="none"):
    """y = act(LN?(x) @ w + b) (+ residual).  x:(M,K), w:(K,N), b:(N,), f32."""
    M, K = x.shape
    Kw, N = w.shape
    assert K == Kw
    fuse_ln = ln_g is not None
    fuse_res = residual is not None

    tm, Mp = _tile(M, _TM)
    tn, Np = _tile(N, _TN)
    if fuse_ln:
        tk, Kp = K, K        # LN needs the whole row; K = n_embd fits VMEM
    else:
        tk, Kp = _tile(K, _TK)
    nk = Kp // tk

    if (Mp, Kp) != (M, K):
        x = jnp.pad(x, ((0, Mp - M), (0, Kp - K)))
    if (Kp, Np) != (K, N):
        w = jnp.pad(w, ((0, Kp - K), (0, Np - N)))
    b2 = b.reshape(1, N)
    if Np != N:
        b2 = jnp.pad(b2, ((0, 0), (0, Np - N)))

    operands = [x, w, b2]
    in_specs = [
        pl.BlockSpec((tm, tk), lambda i, j, k: (i, k)),
        pl.BlockSpec((tk, tn), lambda i, j, k: (k, j)),
        pl.BlockSpec((1, tn), lambda i, j, k: (0, j)),
    ]
    if fuse_ln:
        operands += [ln_g.reshape(1, K), ln_b.reshape(1, K)]
        in_specs += [pl.BlockSpec((1, K), lambda i, j, k: (0, 0)),
                     pl.BlockSpec((1, K), lambda i, j, k: (0, 0))]
    if fuse_res:
        r = residual
        if (Mp, Np) != (M, N):
            r = jnp.pad(r, ((0, Mp - M), (0, Np - N)))
        operands.append(r)
        in_specs.append(pl.BlockSpec((tm, tn), lambda i, j, k: (i, j)))

    out = pl.pallas_call(
        functools.partial(_fused_linear_kernel, activation=activation,
                          fuse_ln=fuse_ln, fuse_res=fuse_res, nk=nk),
        out_shape=jax.ShapeDtypeStruct((Mp, Np), jnp.float32),
        grid_spec=pltpu.PrefetchScalarGridSpec(
            num_scalar_prefetch=0,
            grid=(Mp // tm, Np // tn, nk),
            in_specs=in_specs,
            out_specs=pl.BlockSpec((tm, tn), lambda i, j, k: (i, j)),
            scratch_shapes=[pltpu.VMEM((tm, tn), jnp.float32)],
        ),
        compiler_params=pltpu.CompilerParams(
            dimension_semantics=("parallel", "parallel", "arbitrary"),
            vmem_limit_bytes=_VMEM_LIMIT),
    )(*operands)

    if (Mp, Np) != (M, N):
        out = out[:M, :N]
    return out


# ----------------------- attention on packed QKV ----------------------------

def _attention_kernel(qkv_ref, o_ref, *, n_heads, head_dim, scale):
    # qkv_ref: (1, T, 3*D) packed [q | k | v];  o_ref: (1, T, D)
    qkv = qkv_ref[0]                              # (T, 3*D) loaded once
    d = n_heads * head_dim
    outs = []
    for h in range(n_heads):                      # static unroll; H is small
        lo = h * head_dim
        q = qkv[:, lo:lo + head_dim]
        k = qkv[:, d + lo:d + lo + head_dim]
        v = qkv[:, 2 * d + lo:2 * d + lo + head_dim]
        # contract over head_dim directly -- no materialized k.T
        s = lax.dot_general(q, k, (((1,), (1,)), ((), ())),
                            preferred_element_type=jnp.float32) * scale
        m = jnp.max(s, axis=-1, keepdims=True)
        p = jnp.exp(s - m)
        l = jnp.sum(p, axis=-1, keepdims=True)
        o = jnp.dot(p, v, preferred_element_type=jnp.float32)
        outs.append(o * pl.reciprocal(l, approx=True))
    # single lane-dense (T, D) store (heads concatenated along lanes)
    o_ref[0] = jnp.concatenate(outs, axis=-1).astype(o_ref.dtype)


def attention(qkv, n_heads):
    """qkv: (B, T, 3*D) packed -> (B, T, D).  Bidirectional, no mask."""
    B, T, threeD = qkv.shape
    D = threeD // 3
    head_dim = D // n_heads
    # TODO(synk): flash-style kernel (q-tiles x kv-tiles, online softmax) for
    # long sequences; this version materializes the (T, T) scores per head.
    return pl.pallas_call(
        functools.partial(_attention_kernel, n_heads=n_heads,
                          head_dim=head_dim, scale=1.0 / (head_dim ** 0.5)),
        out_shape=jax.ShapeDtypeStruct((B, T, D), jnp.float32),
        grid=(B,),
        in_specs=[pl.BlockSpec((1, T, threeD), lambda b: (b, 0, 0))],
        out_specs=pl.BlockSpec((1, T, D), lambda b: (b, 0, 0)),
        compiler_params=pltpu.CompilerParams(
            dimension_semantics=("parallel",),
            vmem_limit_bytes=_VMEM_LIMIT),
    )(qkv)


# ----------------- final LayerNorm fused with mean-over-T -------------------

def _ln_pool_kernel(x_ref, g_ref, b_ref, o_ref):
    x = x_ref[0]                                           # (T, D)
    mu = jnp.mean(x, axis=-1, keepdims=True)
    var = jnp.mean(jnp.square(x - mu), axis=-1, keepdims=True)
    y = (x - mu) * lax.rsqrt(var + 1e-5) * g_ref[...] + b_ref[...]
    o_ref[0] = jnp.mean(y, axis=0, keepdims=True)          # (1, D) mean over T


def layernorm_mean_pool(x, g, b):
    """x: (B, T, D) -> (B, D): LayerNorm over D, then mean over T."""
    B, T, D = x.shape
    out = pl.pallas_call(
        _ln_pool_kernel,
        out_shape=jax.ShapeDtypeStruct((B, 1, D), jnp.float32),
        grid=(B,),
        in_specs=[pl.BlockSpec((1, T, D), lambda i: (i, 0, 0)),
                  pl.BlockSpec((1, D), lambda i: (0, 0)),
                  pl.BlockSpec((1, D), lambda i: (0, 0))],
        out_specs=pl.BlockSpec((1, 1, D), lambda i: (i, 0, 0)),
        compiler_params=pltpu.CompilerParams(
            dimension_semantics=("parallel",),
            vmem_limit_bytes=_VMEM_LIMIT),
    )(x, g.reshape(1, D), b.reshape(1, D))
    return out.reshape(B, D)


# --------------------------- parameters / forward ---------------------------

def init_params(key, vocab_size, n_embd, block_size, n_layers):
    def nrm(k, shape, scale=0.02):
        return scale * jax.random.normal(k, shape, dtype=jnp.float32)

    keys = jax.random.split(key, 3 + n_layers)
    params = {
        "tok_emb": nrm(keys[0], (vocab_size, n_embd)),
        "pos_emb": nrm(keys[1], (block_size, n_embd)),
        "ln_f_g": jnp.ones((n_embd,), jnp.float32),
        "ln_f_b": jnp.zeros((n_embd,), jnp.float32),
        # (in, out) layout: y = x @ W + b  (same math as PyTorch x @ W.T + b)
        "w_head": nrm(keys[2], (n_embd, vocab_size)),
        "b_head": jnp.zeros((vocab_size,), jnp.float32),
        "layers": [],
    }
    for li in range(n_layers):
        lk = jax.random.split(keys[3 + li], 4)
        params["layers"].append({
            "ln1_g": jnp.ones((n_embd,), jnp.float32),
            "ln1_b": jnp.zeros((n_embd,), jnp.float32),
            "w_qkv": nrm(lk[0], (n_embd, 3 * n_embd)),
            "b_qkv": jnp.zeros((3 * n_embd,), jnp.float32),
            "w_proj": nrm(lk[1], (n_embd, n_embd)),
            "b_proj": jnp.zeros((n_embd,), jnp.float32),
            "ln2_g": jnp.ones((n_embd,), jnp.float32),
            "ln2_b": jnp.zeros((n_embd,), jnp.float32),
            "w_fc1": nrm(lk[2], (n_embd, 4 * n_embd)),
            "b_fc1": jnp.zeros((4 * n_embd,), jnp.float32),
            "w_fc2": nrm(lk[3], (4 * n_embd, n_embd)),
            "b_fc2": jnp.zeros((n_embd,), jnp.float32),
        })
    return params


@functools.partial(jax.jit, static_argnames=("n_heads",))
def bert_forward(params, tokens, *, n_heads):
    """tokens: (B, T) int32 -> logits (B, vocab)."""
    B, T = tokens.shape
    D = params["tok_emb"].shape[1]

    # token-embedding gather + learned positional embedding (plain JAX glue)
    x = params["tok_emb"][tokens] + params["pos_emb"][:T][None, :, :]
    x = x.reshape(B * T, D)                 # dropout: identity in eval mode

    for layer in params["layers"]:
        # --- self-attention sublayer (pre-LN): LN1 fused into QKV proj ---
        qkv = fused_linear(x, layer["w_qkv"], layer["b_qkv"],
                           ln_g=layer["ln1_g"], ln_b=layer["ln1_b"])   # (B*T,3D)
        attn = attention(qkv.reshape(B, T, 3 * D), n_heads).reshape(B * T, D)
        x = fused_linear(attn, layer["w_proj"], layer["b_proj"],
                         residual=x)                                    # +res

        # --- feed-forward sublayer (pre-LN): LN2->FC1, residual into FC2 ---
        h = fused_linear(x, layer["w_fc1"], layer["b_fc1"],
                         ln_g=layer["ln2_g"], ln_b=layer["ln2_b"],
                         activation="relu")
        x = fused_linear(h, layer["w_fc2"], layer["b_fc2"], residual=x)

    # final LayerNorm fused with mean-over-T pooling; pooling happens BEFORE
    # the vocab projection (mean commutes with the affine head), cutting the
    # head matmul FLOPs and HBM writes by a factor of T.
    pooled = layernorm_mean_pool(x.reshape(B, T, D),
                                 params["ln_f_g"], params["ln_f_b"])    # (B,D)
    logits = fused_linear(pooled, params["w_head"], params["b_head"])   # (B,V)
    return logits


# ---------------------------------- main ------------------------------------

if __name__ == "__main__":
    vocab_size = 64
    n_embd = 32
    block_size = 16
    n_heads = 4
    n_layers = 2
    B, T = 2, 8

    key = jax.random.PRNGKey(0)
    pkey, tkey = jax.random.split(key)
    params = init_params(pkey, vocab_size, n_embd, block_size, n_layers)
    tokens = jax.random.randint(tkey, (B, T), 0, vocab_size, dtype=jnp.int32)

    logits = bert_forward(params, tokens, n_heads=n_heads)
    logits = jax.block_until_ready(logits)
    assert logits.shape == (B, vocab_size)
    assert bool(jnp.all(jnp.isfinite(logits)))
    print("KERNEL_OK")
</pallas_src>

<mosaic_0001>
module attributes {stable_mosaic.version = 11 : i64} {
  func.func @_fused_linear_kernel(%arg0: i32, %arg1: i32, %arg2: i32, %arg3: memref<16x32xf32, #tpu.memory_space<vmem>>, %arg4: memref<32x128xf32, #tpu.memory_space<vmem>>, %arg5: memref<1x128xf32, #tpu.memory_space<vmem>>, %arg6: memref<1x32xf32, #tpu.memory_space<vmem>>, %arg7: memref<1x32xf32, #tpu.memory_space<vmem>>, %arg8: memref<16x128xf32, #tpu.memory_space<vmem>>, %arg9: memref<16x128xf32, #tpu.memory_space<vmem>>) attributes {dimension_semantics = [#tpu.dimension_semantics<parallel>, #tpu.dimension_semantics<parallel>, #tpu.dimension_semantics<arbitrary>], iteration_bounds = array<i64: 1, 1, 1>, scalar_prefetch = 0 : i64, scratch_operands = 1 : i64, tpu.core_type = #tpu.core_type<tc>, window_params = [{transform_indices = @transform_0, window_bounds = array<i64: 16, 32>}, {transform_indices = @transform_1, window_bounds = array<i64: 32, 128>}, {transform_indices = @transform_2, window_bounds = array<i64: 1, 128>}, {pipeline_mode = #tpu.pipeline_mode<synchronous>, transform_indices = @transform_3, window_bounds = array<i64: 1, 32>}, {pipeline_mode = #tpu.pipeline_mode<synchronous>, transform_indices = @transform_4, window_bounds = array<i64: 1, 32>}, {transform_indices = @transform_5, window_bounds = array<i64: 16, 128>}]} {
    %c0_i32 = arith.constant 0 : i32
    %0 = arith.cmpi eq, %arg2, %c0_i32 : i32
    %1 = arith.extui %0 : i1 to i32
    %c0_i32_0 = arith.constant 0 : i32
    %2 = arith.cmpi ne, %1, %c0_i32_0 : i32
    scf.if %2 {
      %cst_19 = arith.constant 0.000000e+00 : f32
      %36 = vector.broadcast %cst_19 : f32 to vector<16x128xf32>
      %c0_20 = arith.constant 0 : index
      %c0_21 = arith.constant 0 : index
      %37 = vector.load %arg9[%c0_20, %c0_21] : memref<16x128xf32, #tpu.memory_space<vmem>>, vector<16x128xf32>
      tpu.vector_store %arg9[%c0_20, %c0_21], %36 {strides = array<i32>} : memref<16x128xf32, #tpu.memory_space<vmem>>, vector<16x128xf32>,
    } else {
    }
    %c0 = arith.constant 0 : index
    %c0_1 = arith.constant 0 : index
    %3 = vector.load %arg3[%c0, %c0_1] : memref<16x32xf32, #tpu.memory_space<vmem>>, vector<16x32xf32>
    %cst = arith.constant dense<0.000000e+00> : vector<16xf32>
    %4 = vector.multi_reduction <add>, %3, %cst [1] : vector<16x32xf32> to vector<16xf32>
    %5 = vector.shape_cast %4 : vector<16xf32> to vector<16x1xf32>
    %cst_2 = arith.constant 3.200000e+01 : f32
    %6 = vector.broadcast %cst_2 : f32 to vector<16x1xf32>
    %7 = arith.divf %5, %6 : vector<16x1xf32>
    %8 = vector.broadcast %7 : vector<16x1xf32> to vector<16x32xf32>
    %9 = arith.subf %3, %8 : vector<16x32xf32>
    %10 = arith.mulf %9, %9 : vector<16x32xf32>
    %cst_3 = arith.constant dense<0.000000e+00> : vector<16xf32>
    %11 = vector.multi_reduction <add>, %10, %cst_3 [1] : vector<16x32xf32> to vector<16xf32>
    %12 = vector.shape_cast %11 : vector<16xf32> to vector<16x1xf32>
    %cst_4 = arith.constant 3.200000e+01 : f32
    %13 = vector.broadcast %cst_4 : f32 to vector<16x1xf32>
    %14 = arith.divf %12, %13 : vector<16x1xf32>
    %15 = vector.broadcast %7 : vector<16x1xf32> to vector<16x32xf32>
    %16 = arith.subf %3, %15 : vector<16x32xf32>
    %cst_5 = arith.constant 9.99999974E-6 : f32
    %17 = vector.broadcast %cst_5 : f32 to vector<16x1xf32>
    %18 = arith.addf %14, %17 : vector<16x1xf32>
    %19 = math.rsqrt %18 : vector<16x1xf32>
    %20 = vector.broadcast %19 : vector<16x1xf32> to vector<16x32xf32>
    %21 = arith.mulf %16, %20 : vector<16x32xf32>
    %c0_6 = arith.constant 0 : index
    %c0_7 = arith.constant 0 : index
    %22 = vector.load %arg6[%c0_6, %c0_7] : memref<1x32xf32, #tpu.memory_space<vmem>>, vector<1x32xf32>
    %23 = vector.broadcast %22 : vector<1x32xf32> to vector<16x32xf32>
    %24 = arith.mulf %21, %23 : vector<16x32xf32>
    %c0_8 = arith.constant 0 : index
    %c0_9 = arith.constant 0 : index
    %25 = vector.load %arg7[%c0_8, %c0_9] : memref<1x32xf32, #tpu.memory_space<vmem>>, vector<1x32xf32>
    %26 = vector.broadcast %25 : vector<1x32xf32> to vector<16x32xf32>
    %27 = arith.addf %24, %26 : vector<16x32xf32>
    %c0_10 = arith.constant 0 : index
    %c0_11 = arith.constant 0 : index
    %28 = vector.load %arg9[%c0_10, %c0_11] : memref<16x128xf32, #tpu.memory_space<vmem>>, vector<16x128xf32>
    %c0_12 = arith.constant 0 : index
    %c0_13 = arith.constant 0 : index
    %29 = vector.load %arg4[%c0_12, %c0_13] : memref<32x128xf32, #tpu.memory_space<vmem>>, vector<32x128xf32>
    %cst_14 = arith.constant dense<0.000000e+00> : vector<16x128xf32>
    %30 = tpu.matmul %27, %29, %cst_14 {dimension_numbers = #tpu.dot_dimension_numbers<[1], [0], [0], [1], [0, 0, 1, 1], [], []>} : vector<16x32xf32>, vector<32x128xf32>, vector<16x128xf32> -> vector<16x128xf32>
    %31 = arith.addf %28, %30 : vector<16x128xf32>
    %c0_15 = arith.constant 0 : index
    %c0_16 = arith.constant 0 : index
    %32 = vector.load %arg9[%c0_15, %c0_16] : memref<16x128xf32, #tpu.memory_space<vmem>>, vector<16x128xf32>
    tpu.vector_store %arg9[%c0_15, %c0_16], %31 {strides = array<i32>} : memref<16x128xf32, #tpu.memory_space<vmem>>, vector<16x128xf32>,
    %c0_i32_17 = arith.constant 0 : i32
    %33 = arith.cmpi eq, %arg2, %c0_i32_17 : i32
    %34 = arith.extui %33 : i1 to i32
    %c0_i32_18 = arith.constant 0 : i32
    %35 = arith.cmpi ne, %34, %c0_i32_18 : i32
    scf.if %35 {
      %c0_19 = arith.constant 0 : index
      %c0_20 = arith.constant 0 : index
      %36 = vector.load %arg9[%c0_19, %c0_20] : memref<16x128xf32, #tpu.memory_space<vmem>>, vector<16x128xf32>
      %c0_21 = arith.constant 0 : index
      %c0_22 = arith.constant 0 : index
      %37 = vector.load %arg5[%c0_21, %c0_22] : memref<1x128xf32, #tpu.memory_space<vmem>>, vector<1x128xf32>
      %38 = vector.broadcast %37 : vector<1x128xf32> to vector<16x128xf32>
      %39 = arith.addf %36, %38 : vector<16x128xf32>
      %cst_23 = arith.constant 0.000000e+00 : f32
      %40 = vector.broadcast %cst_23 : f32 to vector<16x128xf32>
      %41 = arith.maximumf %39, %40 : vector<16x128xf32>
      %c0_24 = arith.constant 0 : index
      %c0_25 = arith.constant 0 : index
      %42 = vector.load %arg8[%c0_24, %c0_25] : memref<16x128xf32, #tpu.memory_space<vmem>>, vector<16x128xf32>
      tpu.vector_store %arg8[%c0_24, %c0_25], %41 {strides = array<i32>} : memref<16x128xf32, #tpu.memory_space<vmem>>, vector<16x128xf32>,
    } else {
    }
    return
  }
  func.func @transform_0(%arg0: i32, %arg1: i32, %arg2: i32) -> (i32, i32) {
    %c0_i32 = arith.constant 0 : i32
    return %arg0, %arg2 : i32, i32
  }
  func.func @transform_1(%arg0: i32, %arg1: i32, %arg2: i32) -> (i32, i32) {
    %c0_i32 = arith.constant 0 : i32
    return %arg2, %arg1 : i32, i32
  }
  func.func @transform_2(%arg0: i32, %arg1: i32, %arg2: i32) -> (i32, i32) {
    %c0_i32 = arith.constant 0 : i32
    %c0_i32_0 = arith.constant 0 : i32
    return %c0_i32, %arg1 : i32, i32
  }
  func.func @transform_3(%arg0: i32, %arg1: i32, %arg2: i32) -> (i32, i32) {
    %c0_i32 = arith.constant 0 : i32
    %c0_i32_0 = arith.constant 0 : i32
    %c0_i32_1 = arith.constant 0 : i32
    return %c0_i32, %c0_i32_0 : i32, i32
  }
  func.func @transform_4(%arg0: i32, %arg1: i32, %arg2: i32) -> (i32, i32) {
    %c0_i32 = arith.constant 0 : i32
    %c0_i32_0 = arith.constant 0 : i32
    %c0_i32_1 = arith.constant 0 : i32
    return %c0_i32, %c0_i32_0 : i32, i32
  }
  func.func @transform_5(%arg0: i32, %arg1: i32, %arg2: i32) -> (i32, i32) {
    %c0_i32 = arith.constant 0 : i32
    return %arg0, %arg1 : i32, i32
  }
}

module attributes {stable_mosaic.version = 11 : i64} {
  func.func @_fused_linear_kernel(%arg0: i32, %arg1: i32, %arg2: i32, %arg3: memref<16x32xf32, #tpu.memory_space<vmem>>, %arg4: memref<32x96xf32, #tpu.memory_space<vmem>>, %arg5: memref<1x96xf32, #tpu.memory_space<vmem>>, %arg6: memref<1x32xf32, #tpu.memory_space<vmem>>, %arg7: memref<1x32xf32, #tpu.memory_space<vmem>>, %arg8: memref<16x96xf32, #tpu.memory_space<vmem>>, %arg9: memref<16x96xf32, #tpu.memory_space<vmem>>) attributes {dimension_semantics = [#tpu.dimension_semantics<parallel>, #tpu.dimension_semantics<parallel>, #tpu.dimension_semantics<arbitrary>], iteration_bounds = array<i64: 1, 1, 1>, scalar_prefetch = 0 : i64, scratch_operands = 1 : i64, tpu.core_type = #tpu.core_type<tc>, window_params = [{transform_indices = @transform_0, window_bounds = array<i64: 16, 32>}, {transform_indices = @transform_1, window_bounds = array<i64: 32, 96>}, {transform_indices = @transform_2, window_bounds = array<i64: 1, 96>}, {pipeline_mode = #tpu.pipeline_mode<synchronous>, transform_indices = @transform_3, window_bounds = array<i64: 1, 32>}, {pipeline_mode = #tpu.pipeline_mode<synchronous>, transform_indices = @transform_4, window_bounds = array<i64: 1, 32>}, {transform_indices = @transform_5, window_bounds = array<i64: 16, 96>}]} {
    %c0_i32 = arith.constant 0 : i32
    %0 = arith.cmpi eq, %arg2, %c0_i32 : i32
    %1 = arith.extui %0 : i1 to i32
    %c0_i32_0 = arith.constant 0 : i32
    %2 = arith.cmpi ne, %1, %c0_i32_0 : i32
    scf.if %2 {
      %cst_19 = arith.constant 0.000000e+00 : f32
      %36 = vector.broadcast %cst_19 : f32 to vector<16x96xf32>
      %c0_20 = arith.constant 0 : index
      %c0_21 = arith.constant 0 : index
      %37 = vector.load %arg9[%c0_20, %c0_21] : memref<16x96xf32, #tpu.memory_space<vmem>>, vector<16x96xf32>
      tpu.vector_store %arg9[%c0_20, %c0_21], %36 {strides = array<i32>} : memref<16x96xf32, #tpu.memory_space<vmem>>, vector<16x96xf32>,
    } else {
    }
    %c0 = arith.constant 0 : index
    %c0_1 = arith.constant 0 : index
    %3 = vector.load %arg3[%c0, %c0_1] : memref<16x32xf32, #tpu.memory_space<vmem>>, vector<16x32xf32>
    %cst = arith.constant dense<0.000000e+00> : vector<16xf32>
    %4 = vector.multi_reduction <add>, %3, %cst [1] : vector<16x32xf32> to vector<16xf32>
    %5 = vector.shape_cast %4 : vector<16xf32> to vector<16x1xf32>
    %cst_2 = arith.constant 3.200000e+01 : f32
    %6 = vector.broadcast %cst_2 : f32 to vector<16x1xf32>
    %7 = arith.divf %5, %6 : vector<16x1xf32>
    %8 = vector.broadcast %7 : vector<16x1xf32> to vector<16x32xf32>
    %9 = arith.subf %3, %8 : vector<16x32xf32>
    %10 = arith.mulf %9, %9 : vector<16x32xf32>
    %cst_3 = arith.constant dense<0.000000e+00> : vector<16xf32>
    %11 = vector.multi_reduction <add>, %10, %cst_3 [1] : vector<16x32xf32> to vector<16xf32>
    %12 = vector.shape_cast %11 : vector<16xf32> to vector<16x1xf32>
    %cst_4 = arith.constant 3.200000e+01 : f32
    %13 = vector.broadcast %cst_4 : f32 to vector<16x1xf32>
    %14 = arith.divf %12, %13 : vector<16x1xf32>
    %15 = vector.broadcast %7 : vector<16x1xf32> to vector<16x32xf32>
    %16 = arith.subf %3, %15 : vector<16x32xf32>
    %cst_5 = arith.constant 9.99999974E-6 : f32
    %17 = vector.broadcast %cst_5 : f32 to vector<16x1xf32>
    %18 = arith.addf %14, %17 : vector<16x1xf32>
    %19 = math.rsqrt %18 : vector<16x1xf32>
    %20 = vector.broadcast %19 : vector<16x1xf32> to vector<16x32xf32>
    %21 = arith.mulf %16, %20 : vector<16x32xf32>
    %c0_6 = arith.constant 0 : index
    %c0_7 = arith.constant 0 : index
    %22 = vector.load %arg6[%c0_6, %c0_7] : memref<1x32xf32, #tpu.memory_space<vmem>>, vector<1x32xf32>
    %23 = vector.broadcast %22 : vector<1x32xf32> to vector<16x32xf32>
    %24 = arith.mulf %21, %23 : vector<16x32xf32>
    %c0_8 = arith.constant 0 : index
    %c0_9 = arith.constant 0 : index
    %25 = vector.load %arg7[%c0_8, %c0_9] : memref<1x32xf32, #tpu.memory_space<vmem>>, vector<1x32xf32>
    %26 = vector.broadcast %25 : vector<1x32xf32> to vector<16x32xf32>
    %27 = arith.addf %24, %26 : vector<16x32xf32>
    %c0_10 = arith.constant 0 : index
    %c0_11 = arith.constant 0 : index
    %28 = vector.load %arg9[%c0_10, %c0_11] : memref<16x96xf32, #tpu.memory_space<vmem>>, vector<16x96xf32>
    %c0_12 = arith.constant 0 : index
    %c0_13 = arith.constant 0 : index
    %29 = vector.load %arg4[%c0_12, %c0_13] : memref<32x96xf32, #tpu.memory_space<vmem>>, vector<32x96xf32>
    %cst_14 = arith.constant dense<0.000000e+00> : vector<16x96xf32>
    %30 = tpu.matmul %27, %29, %cst_14 {dimension_numbers = #tpu.dot_dimension_numbers<[1], [0], [0], [1], [0, 0, 1, 1], [], []>} : vector<16x32xf32>, vector<32x96xf32>, vector<16x96xf32> -> vector<16x96xf32>
    %31 = arith.addf %28, %30 : vector<16x96xf32>
    %c0_15 = arith.constant 0 : index
    %c0_16 = arith.constant 0 : index
    %32 = vector.load %arg9[%c0_15, %c0_16] : memref<16x96xf32, #tpu.memory_space<vmem>>, vector<16x96xf32>
    tpu.vector_store %arg9[%c0_15, %c0_16], %31 {strides = array<i32>} : memref<16x96xf32, #tpu.memory_space<vmem>>, vector<16x96xf32>,
    %c0_i32_17 = arith.constant 0 : i32
    %33 = arith.cmpi eq, %arg2, %c0_i32_17 : i32
    %34 = arith.extui %33 : i1 to i32
    %c0_i32_18 = arith.constant 0 : i32
    %35 = arith.cmpi ne, %34, %c0_i32_18 : i32
    scf.if %35 {
      %c0_19 = arith.constant 0 : index
      %c0_20 = arith.constant 0 : index
      %36 = vector.load %arg9[%c0_19, %c0_20] : memref<16x96xf32, #tpu.memory_space<vmem>>, vector<16x96xf32>
      %c0_21 = arith.constant 0 : index
      %c0_22 = arith.constant 0 : index
      %37 = vector.load %arg5[%c0_21, %c0_22] : memref<1x96xf32, #tpu.memory_space<vmem>>, vector<1x96xf32>
      %38 = vector.broadcast %37 : vector<1x96xf32> to vector<16x96xf32>
      %39 = arith.addf %36, %38 : vector<16x96xf32>
      %c0_23 = arith.constant 0 : index
      %c0_24 = arith.constant 0 : index
      %40 = vector.load %arg8[%c0_23, %c0_24] : memref<16x96xf32, #tpu.memory_space<vmem>>, vector<16x96xf32>
      tpu.vector_store %arg8[%c0_23, %c0_24], %39 {strides = array<i32>} : memref<16x96xf32, #tpu.memory_space<vmem>>, vector<16x96xf32>,
    } else {
    }
    return
  }
  func.func @transform_0(%arg0: i32, %arg1: i32, %arg2: i32) -> (i32, i32) {
    %c0_i32 = arith.constant 0 : i32
    return %arg0, %arg2 : i32, i32
  }
  func.func @transform_1(%arg0: i32, %arg1: i32, %arg2: i32) -> (i32, i32) {
    %c0_i32 = arith.constant 0 : i32
    return %arg2, %arg1 : i32, i32
  }
  func.func @transform_2(%arg0: i32, %arg1: i32, %arg2: i32) -> (i32, i32) {
    %c0_i32 = arith.constant 0 : i32
    %c0_i32_0 = arith.constant 0 : i32
    return %c0_i32, %arg1 : i32, i32
  }
  func.func @transform_3(%arg0: i32, %arg1: i32, %arg2: i32) -> (i32, i32) {
    %c0_i32 = arith.constant 0 : i32
    %c0_i32_0 = arith.constant 0 : i32
    %c0_i32_1 = arith.constant 0 : i32
    return %c0_i32, %c0_i32_0 : i32, i32
  }
  func.func @transform_4(%arg0: i32, %arg1: i32, %arg2: i32) -> (i32, i32) {
    %c0_i32 = arith.constant 0 : i32
    %c0_i32_0 = arith.constant 0 : i32
    %c0_i32_1 = arith.constant 0 : i32
    return %c0_i32, %c0_i32_0 : i32, i32
  }
  func.func @transform_5(%arg0: i32, %arg1: i32, %arg2: i32) -> (i32, i32) {
    %c0_i32 = arith.constant 0 : i32
    return %arg0, %arg1 : i32, i32
  }
}

module attributes {stable_mosaic.version = 11 : i64} {
  func.func @_fused_linear_kernel(%arg0: i32, %arg1: i32, %arg2: i32, %arg3: memref<16x32xf32, #tpu.memory_space<vmem>>, %arg4: memref<32x32xf32, #tpu.memory_space<vmem>>, %arg5: memref<1x32xf32, #tpu.memory_space<vmem>>, %arg6: memref<16x32xf32, #tpu.memory_space<vmem>>, %arg7: memref<16x32xf32, #tpu.memory_space<vmem>>, %arg8: memref<16x32xf32, #tpu.memory_space<vmem>>) attributes {dimension_semantics = [#tpu.dimension_semantics<parallel>, #tpu.dimension_semantics<parallel>, #tpu.dimension_semantics<arbitrary>], iteration_bounds = array<i64: 1, 1, 1>, scalar_prefetch = 0 : i64, scratch_operands = 1 : i64, tpu.core_type = #tpu.core_type<tc>, window_params = [{transform_indices = @transform_0, window_bounds = array<i64: 16, 32>}, {transform_indices = @transform_1, window_bounds = array<i64: 32, 32>}, {transform_indices = @transform_2, window_bounds = array<i64: 1, 32>}, {transform_indices = @transform_3, window_bounds = array<i64: 16, 32>}, {transform_indices = @transform_4, window_bounds = array<i64: 16, 32>}]} {
    %c0_i32 = arith.constant 0 : i32
    %0 = arith.cmpi eq, %arg2, %c0_i32 : i32
    %1 = arith.extui %0 : i1 to i32
    %c0_i32_0 = arith.constant 0 : i32
    %2 = arith.cmpi ne, %1, %c0_i32_0 : i32
    scf.if %2 {
      %cst_10 = arith.constant 0.000000e+00 : f32
      %12 = vector.broadcast %cst_10 : f32 to vector<16x32xf32>
      %c0_11 = arith.constant 0 : index
      %c0_12 = arith.constant 0 : index
      %13 = vector.load %arg8[%c0_11, %c0_12] : memref<16x32xf32, #tpu.memory_space<vmem>>, vector<16x32xf32>
      tpu.vector_store %arg8[%c0_11, %c0_12], %12 {strides = array<i32>} : memref<16x32xf32, #tpu.memory_space<vmem>>, vector<16x32xf32>,
    } else {
    }
    %c0 = arith.constant 0 : index
    %c0_1 = arith.constant 0 : index
    %3 = vector.load %arg3[%c0, %c0_1] : memref<16x32xf32, #tpu.memory_space<vmem>>, vector<16x32xf32>
    %c0_2 = arith.constant 0 : index
    %c0_3 = arith.constant 0 : index
    %4 = vector.load %arg8[%c0_2, %c0_3] : memref<16x32xf32, #tpu.memory_space<vmem>>, vector<16x32xf32>
    %c0_4 = arith.constant 0 : index
    %c0_5 = arith.constant 0 : index
    %5 = vector.load %arg4[%c0_4, %c0_5] : memref<32x32xf32, #tpu.memory_space<vmem>>, vector<32x32xf32>
    %cst = arith.constant dense<0.000000e+00> : vector<16x32xf32>
    %6 = tpu.matmul %3, %5, %cst {dimension_numbers = #tpu.dot_dimension_numbers<[1], [0], [0], [1], [0, 0, 1, 1], [], []>} : vector<16x32xf32>, vector<32x32xf32>, vector<16x32xf32> -> vector<16x32xf32>
    %7 = arith.addf %4, %6 : vector<16x32xf32>
    %c0_6 = arith.constant 0 : index
    %c0_7 = arith.constant 0 : index
    %8 = vector.load %arg8[%c0_6, %c0_7] : memref<16x32xf32, #tpu.memory_space<vmem>>, vector<16x32xf32>
    tpu.vector_store %arg8[%c0_6, %c0_7], %7 {strides = array<i32>} : memref<16x32xf32, #tpu.memory_space<vmem>>, vector<16x32xf32>,
    %c0_i32_8 = arith.constant 0 : i32
    %9 = arith.cmpi eq, %arg2, %c0_i32_8 : i32
    %10 = arith.extui %9 : i1 to i32
    %c0_i32_9 = arith.constant 0 : i32
    %11 = arith.cmpi ne, %10, %c0_i32_9 : i32
    scf.if %11 {
      %c0_10 = arith.constant 0 : index
      %c0_11 = arith.constant 0 : index
      %12 = vector.load %arg8[%c0_10, %c0_11] : memref<16x32xf32, #tpu.memory_space<vmem>>, vector<16x32xf32>
      %c0_12 = arith.constant 0 : index
      %c0_13 = arith.constant 0 : index
      %13 = vector.load %arg5[%c0_12, %c0_13] : memref<1x32xf32, #tpu.memory_space<vmem>>, vector<1x32xf32>
      %14 = vector.broadcast %13 : vector<1x32xf32> to vector<16x32xf32>
      %15 = arith.addf %12, %14 : vector<16x32xf32>
      %c0_14 = arith.constant 0 : index
      %c0_15 = arith.constant 0 : index
      %16 = vector.load %arg6[%c0_14, %c0_15] : memref<16x32xf32, #tpu.memory_space<vmem>>, vector<16x32xf32>
      %17 = arith.addf %15, %16 : vector<16x32xf32>
      %c0_16 = arith.constant 0 : index
      %c0_17 = arith.constant 0 : index
      %18 = vector.load %arg7[%c0_16, %c0_17] : memref<16x32xf32, #tpu.memory_space<vmem>>, vector<16x32xf32>
      tpu.vector_store %arg7[%c0_16, %c0_17], %17 {strides = array<i32>} : memref<16x32xf32, #tpu.memory_space<vmem>>, vector<16x32xf32>,
    } else {
    }
    return
  }
  func.func @transform_0(%arg0: i32, %arg1: i32, %arg2: i32) -> (i32, i32) {
    %c0_i32 = arith.constant 0 : i32
    return %arg0, %arg2 : i32, i32
  }
  func.func @transform_1(%arg0: i32, %arg1: i32, %arg2: i32) -> (i32, i32) {
    %c0_i32 = arith.constant 0 : i32
    return %arg2, %arg1 : i32, i32
  }
  func.func @transform_2(%arg0: i32, %arg1: i32, %arg2: i32) -> (i32, i32) {
    %c0_i32 = arith.constant 0 : i32
    %c0_i32_0 = arith.constant 0 : i32
    return %c0_i32, %arg1 : i32, i32
  }
  func.func @transform_3(%arg0: i32, %arg1: i32, %arg2: i32) -> (i32, i32) {
    %c0_i32 = arith.constant 0 : i32
    return %arg0, %arg1 : i32, i32
  }
  func.func @transform_4(%arg0: i32, %arg1: i32, %arg2: i32) -> (i32, i32) {
    %c0_i32 = arith.constant 0 : i32
    return %arg0, %arg1 : i32, i32
  }
}

module attributes {stable_mosaic.version = 11 : i64} {
  func.func @_attention_kernel(%arg0: i32, %arg1: memref<1x8x96xf32, #tpu.memory_space<vmem>>, %arg2: memref<1x8x32xf32, #tpu.memory_space<vmem>>) attributes {dimension_semantics = [#tpu.dimension_semantics<parallel>], iteration_bounds = array<i64: 2>, scalar_prefetch = 0 : i64, scratch_operands = 0 : i64, tpu.core_type = #tpu.core_type<tc>, window_params = [{transform_indices = @transform_0, window_bounds = array<i64: 1, 8, 96>}, {transform_indices = @transform_1, window_bounds = array<i64: 1, 8, 32>}]} {
    %c0 = arith.constant 0 : index
    %c0_0 = arith.constant 0 : index
    %c0_1 = arith.constant 0 : index
    %0 = vector.load %arg1[%c0, %c0_0, %c0_1] : memref<1x8x96xf32, #tpu.memory_space<vmem>>, vector<1x8x96xf32>
    %1 = vector.shape_cast %0 : vector<1x8x96xf32> to vector<8x96xf32>
    %2 = vector.extract_strided_slice %1 {offsets = [0, 0], sizes = [8, 8], strides = [1, 1]} : vector<8x96xf32> to vector<8x8xf32>
    %3 = vector.extract_strided_slice %1 {offsets = [0, 32], sizes = [8, 8], strides = [1, 1]} : vector<8x96xf32> to vector<8x8xf32>
    %4 = vector.extract_strided_slice %1 {offsets = [0, 64], sizes = [8, 8], strides = [1, 1]} : vector<8x96xf32> to vector<8x8xf32>
    %cst = arith.constant dense<0.000000e+00> : vector<8x8xf32>
    %5 = tpu.matmul %2, %3, %cst {dimension_numbers = #tpu.dot_dimension_numbers<[1], [1], [0], [0], [0, 0, 1, 0], [], []>} : vector<8x8xf32>, vector<8x8xf32>, vector<8x8xf32> -> vector<8x8xf32>
    %cst_2 = arith.constant 0.353553385 : f32
    %6 = vector.broadcast %cst_2 : f32 to vector<8x8xf32>
    %7 = arith.mulf %5, %6 : vector<8x8xf32>
    %cst_3 = arith.constant dense<0xFF800000> : vector<8xf32>
    %8 = vector.multi_reduction <maximumf>, %7, %cst_3 [1] : vector<8x8xf32> to vector<8xf32>
    %9 = vector.shape_cast %8 : vector<8xf32> to vector<8x1xf32>
    %10 = vector.broadcast %9 : vector<8x1xf32> to vector<8x8xf32>
    %11 = arith.subf %7, %10 : vector<8x8xf32>
    %12 = math.exp %11 : vector<8x8xf32>
    %cst_4 = arith.constant dense<0.000000e+00> : vector<8xf32>
    %13 = vector.multi_reduction <add>, %12, %cst_4 [1] : vector<8x8xf32> to vector<8xf32>
    %14 = vector.shape_cast %13 : vector<8xf32> to vector<8x1xf32>
    %cst_5 = arith.constant dense<0.000000e+00> : vector<8x8xf32>
    %15 = tpu.matmul %12, %4, %cst_5 {dimension_numbers = #tpu.dot_dimension_numbers<[1], [0], [0], [1], [0, 0, 1, 1], [], []>} : vector<8x8xf32>, vector<8x8xf32>, vector<8x8xf32> -> vector<8x8xf32>
    %16 = tpu.reciprocal %14 {approx = true} : vector<8x1xf32> -> vector<8x1xf32>
    %17 = vector.broadcast %16 : vector<8x1xf32> to vector<8x8xf32>
    %18 = arith.mulf %15, %17 : vector<8x8xf32>
    %19 = vector.extract_strided_slice %1 {offsets = [0, 8], sizes = [8, 8], strides = [1, 1]} : vector<8x96xf32> to vector<8x8xf32>
    %20 = vector.extract_strided_slice %1 {offsets = [0, 40], sizes = [8, 8], strides = [1, 1]} : vector<8x96xf32> to vector<8x8xf32>
    %21 = vector.extract_strided_slice %1 {offsets = [0, 72], sizes = [8, 8], strides = [1, 1]} : vector<8x96xf32> to vector<8x8xf32>
    %cst_6 = arith.constant dense<0.000000e+00> : vector<8x8xf32>
    %22 = tpu.matmul %19, %20, %cst_6 {dimension_numbers = #tpu.dot_dimension_numbers<[1], [1], [0], [0], [0, 0, 1, 0], [], []>} : vector<8x8xf32>, vector<8x8xf32>, vector<8x8xf32> -> vector<8x8xf32>
    %cst_7 = arith.constant 0.353553385 : f32
    %23 = vector.broadcast %cst_7 : f32 to vector<8x8xf32>
    %24 = arith.mulf %22, %23 : vector<8x8xf32>
    %cst_8 = arith.constant dense<0xFF800000> : vector<8xf32>
    %25 = vector.multi_reduction <maximumf>, %24, %cst_8 [1] : vector<8x8xf32> to vector<8xf32>
    %26 = vector.shape_cast %25 : vector<8xf32> to vector<8x1xf32>
    %27 = vector.broadcast %26 : vector<8x1xf32> to vector<8x8xf32>
    %28 = arith.subf %24, %27 : vector<8x8xf32>
    %29 = math.exp %28 : vector<8x8xf32>
    %cst_9 = arith.constant dense<0.000000e+00> : vector<8xf32>
    %30 = vector.multi_reduction <add>, %29, %cst_9 [1] : vector<8x8xf32> to vector<8xf32>
    %31 = vector.shape_cast %30 : vector<8xf32> to vector<8x1xf32>
    %cst_10 = arith.constant dense<0.000000e+00> : vector<8x8xf32>
    %32 = tpu.matmul %29, %21, %cst_10 {dimension_numbers = #tpu.dot_dimension_numbers<[1], [0], [0], [1], [0, 0, 1, 1], [], []>} : vector<8x8xf32>, vector<8x8xf32>, vector<8x8xf32> -> vector<8x8xf32>
    %33 = tpu.reciprocal %31 {approx = true} : vector<8x1xf32> -> vector<8x1xf32>
    %34 = vector.broadcast %33 : vector<8x1xf32> to vector<8x8xf32>
    %35 = arith.mulf %32, %34 : vector<8x8xf32>
    %36 = vector.extract_strided_slice %1 {offsets = [0, 16], sizes = [8, 8], strides = [1, 1]} : vector<8x96xf32> to vector<8x8xf32>
    %37 = vector.extract_strided_slice %1 {offsets = [0, 48], sizes = [8, 8], strides = [1, 1]} : vector<8x96xf32> to vector<8x8xf32>
    %38 = vector.extract_strided_slice %1 {offsets = [0, 80], sizes = [8, 8], strides = [1, 1]} : vector<8x96xf32> to vector<8x8xf32>
    %cst_11 = arith.constant dense<0.000000e+00> : vector<8x8xf32>
    %39 = tpu.matmul %36, %37, %cst_11 {dimension_numbers = #tpu.dot_dimension_numbers<[1], [1], [0], [0], [0, 0, 1, 0], [], []>} : vector<8x8xf32>, vector<8x8xf32>, vector<8x8xf32> -> vector<8x8xf32>
    %cst_12 = arith.constant 0.353553385 : f32
    %40 = vector.broadcast %cst_12 : f32 to vector<8x8xf32>
    %41 = arith.mulf %39, %40 : vector<8x8xf32>
    %cst_13 = arith.constant dense<0xFF800000> : vector<8xf32>
    %42 = vector.multi_reduction <maximumf>, %41, %cst_13 [1] : vector<8x8xf32> to vector<8xf32>
    %43 = vector.shape_cast %42 : vector<8xf32> to vector<8x1xf32>
    %44 = vector.broadcast %43 : vector<8x1xf32> to vector<8x8xf32>
    %45 = arith.subf %41, %44 : vector<8x8xf32>
    %46 = math.exp %45 : vector<8x8xf32>
    %cst_14 = arith.constant dense<0.000000e+00> : vector<8xf32>
    %47 = vector.multi_reduction <add>, %46, %cst_14 [1] : vector<8x8xf32> to vector<8xf32>
    %48 = vector.shape_cast %47 : vector<8xf32> to vector<8x1xf32>
    %cst_15 = arith.constant dense<0.000000e+00> : vector<8x8xf32>
    %49 = tpu.matmul %46, %38, %cst_15 {dimension_numbers = #tpu.dot_dimension_numbers<[1], [0], [0], [1], [0, 0, 1, 1], [], []>} : vector<8x8xf32>, vector<8x8xf32>, vector<8x8xf32> -> vector<8x8xf32>
    %50 = tpu.reciprocal %48 {approx = true} : vector<8x1xf32> -> vector<8x1xf32>
    %51 = vector.broadcast %50 : vector<8x1xf32> to vector<8x8xf32>
    %52 = arith.mulf %49, %51 : vector<8x8xf32>
    %53 = vector.extract_strided_slice %1 {offsets = [0, 24], sizes = [8, 8], strides = [1, 1]} : vector<8x96xf32> to vector<8x8xf32>
    %54 = vector.extract_strided_slice %1 {offsets = [0, 56], sizes = [8, 8], strides = [1, 1]} : vector<8x96xf32> to vector<8x8xf32>
    %55 = vector.extract_strided_slice %1 {offsets = [0, 88], sizes = [8, 8], strides = [1, 1]} : vector<8x96xf32> to vector<8x8xf32>
    %cst_16 = arith.constant dense<0.000000e+00> : vector<8x8xf32>
    %56 = tpu.matmul %53, %54, %cst_16 {dimension_numbers = #tpu.dot_dimension_numbers<[1], [1], [0], [0], [0, 0, 1, 0], [], []>} : vector<8x8xf32>, vector<8x8xf32>, vector<8x8xf32> -> vector<8x8xf32>
    %cst_17 = arith.constant 0.353553385 : f32
    %57 = vector.broadcast %cst_17 : f32 to vector<8x8xf32>
    %58 = arith.mulf %56, %57 : vector<8x8xf32>
    %cst_18 = arith.constant dense<0xFF800000> : vector<8xf32>
    %59 = vector.multi_reduction <maximumf>, %58, %cst_18 [1] : vector<8x8xf32> to vector<8xf32>
    %60 = vector.shape_cast %59 : vector<8xf32> to vector<8x1xf32>
    %61 = vector.broadcast %60 : vector<8x1xf32> to vector<8x8xf32>
    %62 = arith.subf %58, %61 : vector<8x8xf32>
    %63 = math.exp %62 : vector<8x8xf32>
    %cst_19 = arith.constant dense<0.000000e+00> : vector<8xf32>
    %64 = vector.multi_reduction <add>, %63, %cst_19 [1] : vector<8x8xf32> to vector<8xf32>
    %65 = vector.shape_cast %64 : vector<8xf32> to vector<8x1xf32>
    %cst_20 = arith.constant dense<0.000000e+00> : vector<8x8xf32>
    %66 = tpu.matmul %63, %55, %cst_20 {dimension_numbers = #tpu.dot_dimension_numbers<[1], [0], [0], [1], [0, 0, 1, 1], [], []>} : vector<8x8xf32>, vector<8x8xf32>, vector<8x8xf32> -> vector<8x8xf32>
    %67 = tpu.reciprocal %65 {approx = true} : vector<8x1xf32> -> vector<8x1xf32>
    %68 = vector.broadcast %67 : vector<8x1xf32> to vector<8x8xf32>
    %69 = arith.mulf %66, %68 : vector<8x8xf32>
    %70 = tpu.concatenate %18, %35, %52, %69 in 1 : vector<8x8xf32>, vector<8x8xf32>, vector<8x8xf32>, vector<8x8xf32> -> vector<8x32xf32>
    %c0_21 = arith.constant 0 : index
    %c0_22 = arith.constant 0 : index
    %c0_23 = arith.constant 0 : index
    %71 = vector.load %arg2[%c0_21, %c0_22, %c0_23] : memref<1x8x32xf32, #tpu.memory_space<vmem>>, vector<1x8x32xf32>
    %72 = vector.shape_cast %71 : vector<1x8x32xf32> to vector<8x32xf32>
    %73 = vector.shape_cast %70 : vector<8x32xf32> to vector<1x8x32xf32>
    tpu.vector_store %arg2[%c0_21, %c0_22, %c0_23], %73 {strides = array<i32>} : memref<1x8x32xf32, #tpu.memory_space<vmem>>, vector<1x8x32xf32>,
    return
  }
  func.func @transform_0(%arg0: i32) -> (i32, i32, i32) {
    %c0_i32 = arith.constant 0 : i32
    %c0_i32_0 = arith.constant 0 : i32
    %c0_i32_1 = arith.constant 0 : i32
    return %arg0, %c0_i32, %c0_i32_0 : i32, i32, i32
  }
  func.func @transform_1(%arg0: i32) -> (i32, i32, i32) {
    %c0_i32 = arith.constant 0 : i32
    %c0_i32_0 = arith.constant 0 : i32
    %c0_i32_1 = arith.constant 0 : i32
    return %arg0, %c0_i32, %c0_i32_0 : i32, i32, i32
  }
}

module attributes {stable_mosaic.version = 11 : i64} {
  func.func @_fused_linear_kernel(%arg0: i32, %arg1: i32, %arg2: i32, %arg3: memref<16x128xf32, #tpu.memory_space<vmem>>, %arg4: memref<128x32xf32, #tpu.memory_space<vmem>>, %arg5: memref<1x32xf32, #tpu.memory_space<vmem>>, %arg6: memref<16x32xf32, #tpu.memory_space<vmem>>, %arg7: memref<16x32xf32, #tpu.memory_space<vmem>>, %arg8: memref<16x32xf32, #tpu.memory_space<vmem>>) attributes {dimension_semantics = [#tpu.dimension_semantics<parallel>, #tpu.dimension_semantics<parallel>, #tpu.dimension_semantics<arbitrary>], iteration_bounds = array<i64: 1, 1, 1>, scalar_prefetch = 0 : i64, scratch_operands = 1 : i64, tpu.core_type = #tpu.core_type<tc>, window_params = [{transform_indices = @transform_0, window_bounds = array<i64: 16, 128>}, {transform_indices = @transform_1, window_bounds = array<i64: 128, 32>}, {transform_indices = @transform_2, window_bounds = array<i64: 1, 32>}, {transform_indices = @transform_3, window_bounds = array<i64: 16, 32>}, {transform_indices = @transform_4, window_bounds = array<i64: 16, 32>}]} {
    %c0_i32 = arith.constant 0 : i32
    %0 = arith.cmpi eq, %arg2, %c0_i32 : i32
    %1 = arith.extui %0 : i1 to i32
    %c0_i32_0 = arith.constant 0 : i32
    %2 = arith.cmpi ne, %1, %c0_i32_0 : i32
    scf.if %2 {
      %cst_10 = arith.constant 0.000000e+00 : f32
      %12 = vector.broadcast %cst_10 : f32 to vector<16x32xf32>
      %c0_11 = arith.constant 0 : index
      %c0_12 = arith.constant 0 : index
      %13 = vector.load %arg8[%c0_11, %c0_12] : memref<16x32xf32, #tpu.memory_space<vmem>>, vector<16x32xf32>
      tpu.vector_store %arg8[%c0_11, %c0_12], %12 {strides = array<i32>} : memref<16x32xf32, #tpu.memory_space<vmem>>, vector<16x32xf32>,
    } else {
    }
    %c0 = arith.constant 0 : index
    %c0_1 = arith.constant 0 : index
    %3 = vector.load %arg3[%c0, %c0_1] : memref<16x128xf32, #tpu.memory_space<vmem>>, vector<16x128xf32>
    %c0_2 = arith.constant 0 : index
    %c0_3 = arith.constant 0 : index
    %4 = vector.load %arg8[%c0_2, %c0_3] : memref<16x32xf32, #tpu.memory_space<vmem>>, vector<16x32xf32>
    %c0_4 = arith.constant 0 : index
    %c0_5 = arith.constant 0 : index
    %5 = vector.load %arg4[%c0_4, %c0_5] : memref<128x32xf32, #tpu.memory_space<vmem>>, vector<128x32xf32>
    %cst = arith.constant dense<0.000000e+00> : vector<16x32xf32>
    %6 = tpu.matmul %3, %5, %cst {dimension_numbers = #tpu.dot_dimension_numbers<[1], [0], [0], [1], [0, 0, 1, 1], [], []>} : vector<16x128xf32>, vector<128x32xf32>, vector<16x32xf32> -> vector<16x32xf32>
    %7 = arith.addf %4, %6 : vector<16x32xf32>
    %c0_6 = arith.constant 0 : index
    %c0_7 = arith.constant 0 : index
    %8 = vector.load %arg8[%c0_6, %c0_7] : memref<16x32xf32, #tpu.memory_space<vmem>>, vector<16x32xf32>
    tpu.vector_store %arg8[%c0_6, %c0_7], %7 {strides = array<i32>} : memref<16x32xf32, #tpu.memory_space<vmem>>, vector<16x32xf32>,
    %c0_i32_8 = arith.constant 0 : i32
    %9 = arith.cmpi eq, %arg2, %c0_i32_8 : i32
    %10 = arith.extui %9 : i1 to i32
    %c0_i32_9 = arith.constant 0 : i32
    %11 = arith.cmpi ne, %10, %c0_i32_9 : i32
    scf.if %11 {
      %c0_10 = arith.constant 0 : index
      %c0_11 = arith.constant 0 : index
      %12 = vector.load %arg8[%c0_10, %c0_11] : memref<16x32xf32, #tpu.memory_space<vmem>>, vector<16x32xf32>
      %c0_12 = arith.constant 0 : index
      %c0_13 = arith.constant 0 : index
      %13 = vector.load %arg5[%c0_12, %c0_13] : memref<1x32xf32, #tpu.memory_space<vmem>>, vector<1x32xf32>
      %14 = vector.broadcast %13 : vector<1x32xf32> to vector<16x32xf32>
      %15 = arith.addf %12, %14 : vector<16x32xf32>
      %c0_14 = arith.constant 0 : index
      %c0_15 = arith.constant 0 : index
      %16 = vector.load %arg6[%c0_14, %c0_15] : memref<16x32xf32, #tpu.memory_space<vmem>>, vector<16x32xf32>
      %17 = arith.addf %15, %16 : vector<16x32xf32>
      %c0_16 = arith.constant 0 : index
      %c0_17 = arith.constant 0 : index
      %18 = vector.load %arg7[%c0_16, %c0_17] : memref<16x32xf32, #tpu.memory_space<vmem>>, vector<16x32xf32>
      tpu.vector_store %arg7[%c0_16, %c0_17], %17 {strides = array<i32>} : memref<16x32xf32, #tpu.memory_space<vmem>>, vector<16x32xf32>,
    } else {
    }
    return
  }
  func.func @transform_0(%arg0: i32, %arg1: i32, %arg2: i32) -> (i32, i32) {
    %c0_i32 = arith.constant 0 : i32
    return %arg0, %arg2 : i32, i32
  }
  func.func @transform_1(%arg0: i32, %arg1: i32, %arg2: i32) -> (i32, i32) {
    %c0_i32 = arith.constant 0 : i32
    return %arg2, %arg1 : i32, i32
  }
  func.func @transform_2(%arg0: i32, %arg1: i32, %arg2: i32) -> (i32, i32) {
    %c0_i32 = arith.constant 0 : i32
    %c0_i32_0 = arith.constant 0 : i32
    return %c0_i32, %arg1 : i32, i32
  }
  func.func @transform_3(%arg0: i32, %arg1: i32, %arg2: i32) -> (i32, i32) {
    %c0_i32 = arith.constant 0 : i32
    return %arg0, %arg1 : i32, i32
  }
  func.func @transform_4(%arg0: i32, %arg1: i32, %arg2: i32) -> (i32, i32) {
    %c0_i32 = arith.constant 0 : i32
    return %arg0, %arg1 : i32, i32
  }
}

module attributes {stable_mosaic.version = 11 : i64} {
  func.func @_ln_pool_kernel(%arg0: i32, %arg1: memref<1x8x32xf32, #tpu.memory_space<vmem>>, %arg2: memref<1x32xf32, #tpu.memory_space<vmem>>, %arg3: memref<1x32xf32, #tpu.memory_space<vmem>>, %arg4: memref<1x1x32xf32, #tpu.memory_space<vmem>>) attributes {dimension_semantics = [#tpu.dimension_semantics<parallel>], iteration_bounds = array<i64: 2>, scalar_prefetch = 0 : i64, scratch_operands = 0 : i64, tpu.core_type = #tpu.core_type<tc>, window_params = [{transform_indices = @transform_0, window_bounds = array<i64: 1, 8, 32>}, {pipeline_mode = #tpu.pipeline_mode<synchronous>, transform_indices = @transform_1, window_bounds = array<i64: 1, 32>}, {pipeline_mode = #tpu.pipeline_mode<synchronous>, transform_indices = @transform_2, window_bounds = array<i64: 1, 32>}, {transform_indices = @transform_3, window_bounds = array<i64: 1, 1, 32>}]} {
    %c0 = arith.constant 0 : index
    %c0_0 = arith.constant 0 : index
    %c0_1 = arith.constant 0 : index
    %0 = vector.load %arg1[%c0, %c0_0, %c0_1] : memref<1x8x32xf32, #tpu.memory_space<vmem>>, vector<1x8x32xf32>
    %1 = vector.shape_cast %0 : vector<1x8x32xf32> to vector<8x32xf32>
    %cst = arith.constant dense<0.000000e+00> : vector<8xf32>
    %2 = vector.multi_reduction <add>, %1, %cst [1] : vector<8x32xf32> to vector<8xf32>
    %3 = vector.shape_cast %2 : vector<8xf32> to vector<8x1xf32>
    %cst_2 = arith.constant 3.200000e+01 : f32
    %4 = vector.broadcast %cst_2 : f32 to vector<8x1xf32>
    %5 = arith.divf %3, %4 : vector<8x1xf32>
    %6 = vector.broadcast %5 : vector<8x1xf32> to vector<8x32xf32>
    %7 = arith.subf %1, %6 : vector<8x32xf32>
    %8 = arith.mulf %7, %7 : vector<8x32xf32>
    %cst_3 = arith.constant dense<0.000000e+00> : vector<8xf32>
    %9 = vector.multi_reduction <add>, %8, %cst_3 [1] : vector<8x32xf32> to vector<8xf32>
    %10 = vector.shape_cast %9 : vector<8xf32> to vector<8x1xf32>
    %cst_4 = arith.constant 3.200000e+01 : f32
    %11 = vector.broadcast %cst_4 : f32 to vector<8x1xf32>
    %12 = arith.divf %10, %11 : vector<8x1xf32>
    %13 = vector.broadcast %5 : vector<8x1xf32> to vector<8x32xf32>
    %14 = arith.subf %1, %13 : vector<8x32xf32>
    %cst_5 = arith.constant 9.99999974E-6 : f32
    %15 = vector.broadcast %cst_5 : f32 to vector<8x1xf32>
    %16 = arith.addf %12, %15 : vector<8x1xf32>
    %17 = math.rsqrt %16 : vector<8x1xf32>
    %18 = vector.broadcast %17 : vector<8x1xf32> to vector<8x32xf32>
    %19 = arith.mulf %14, %18 : vector<8x32xf32>
    %c0_6 = arith.constant 0 : index
    %c0_7 = arith.constant 0 : index
    %20 = vector.load %arg2[%c0_6, %c0_7] : memref<1x32xf32, #tpu.memory_space<vmem>>, vector<1x32xf32>
    %21 = vector.broadcast %20 : vector<1x32xf32> to vector<8x32xf32>
    %22 = arith.mulf %19, %21 : vector<8x32xf32>
    %c0_8 = arith.constant 0 : index
    %c0_9 = arith.constant 0 : index
    %23 = vector.load %arg3[%c0_8, %c0_9] : memref<1x32xf32, #tpu.memory_space<vmem>>, vector<1x32xf32>
    %24 = vector.broadcast %23 : vector<1x32xf32> to vector<8x32xf32>
    %25 = arith.addf %22, %24 : vector<8x32xf32>
    %cst_10 = arith.constant dense<0.000000e+00> : vector<32xf32>
    %26 = vector.multi_reduction <add>, %25, %cst_10 [0] : vector<8x32xf32> to vector<32xf32>
    %27 = vector.shape_cast %26 : vector<32xf32> to vector<1x32xf32>
    %cst_11 = arith.constant 8.000000e+00 : f32
    %28 = vector.broadcast %cst_11 : f32 to vector<1x32xf32>
    %29 = arith.divf %27, %28 : vector<1x32xf32>
    %c0_12 = arith.constant 0 : index
    %c0_13 = arith.constant 0 : index
    %c0_14 = arith.constant 0 : index
    %30 = vector.load %arg4[%c0_12, %c0_13, %c0_14] : memref<1x1x32xf32, #tpu.memory_space<vmem>>, vector<1x1x32xf32>
    %31 = vector.shape_cast %30 : vector<1x1x32xf32> to vector<1x32xf32>
    %32 = vector.shape_cast %29 : vector<1x32xf32> to vector<1x1x32xf32>
    tpu.vector_store %arg4[%c0_12, %c0_13, %c0_14], %32 {strides = array<i32>} : memref<1x1x32xf32, #tpu.memory_space<vmem>>, vector<1x1x32xf32>,
    return
  }
  func.func @transform_0(%arg0: i32) -> (i32, i32, i32) {
    %c0_i32 = arith.constant 0 : i32
    %c0_i32_0 = arith.constant 0 : i32
    %c0_i32_1 = arith.constant 0 : i32
    return %arg0, %c0_i32, %c0_i32_0 : i32, i32, i32
  }
  func.func @transform_1(%arg0: i32) -> (i32, i32) {
    %c0_i32 = arith.constant 0 : i32
    %c0_i32_0 = arith.constant 0 : i32
    %c0_i32_1 = arith.constant 0 : i32
    return %c0_i32, %c0_i32_0 : i32, i32
  }
  func.func @transform_2(%arg0: i32) -> (i32, i32) {
    %c0_i32 = arith.constant 0 : i32
    %c0_i32_0 = arith.constant 0 : i32
    %c0_i32_1 = arith.constant 0 : i32
    return %c0_i32, %c0_i32_0 : i32, i32
  }
  func.func @transform_3(%arg0: i32) -> (i32, i32, i32) {
    %c0_i32 = arith.constant 0 : i32
    %c0_i32_0 = arith.constant 0 : i32
    %c0_i32_1 = arith.constant 0 : i32
    return %arg0, %c0_i32, %c0_i32_0 : i32, i32, i32
  }
}

module attributes {stable_mosaic.version = 11 : i64} {
  func.func @_fused_linear_kernel(%arg0: i32, %arg1: i32, %arg2: i32, %arg3: memref<2x32xf32, #tpu.memory_space<vmem>>, %arg4: memref<32x64xf32, #tpu.memory_space<vmem>>, %arg5: memref<1x64xf32, #tpu.memory_space<vmem>>, %arg6: memref<2x64xf32, #tpu.memory_space<vmem>>, %arg7: memref<2x64xf32, #tpu.memory_space<vmem>>) attributes {dimension_semantics = [#tpu.dimension_semantics<parallel>, #tpu.dimension_semantics<parallel>, #tpu.dimension_semantics<arbitrary>], iteration_bounds = array<i64: 1, 1, 1>, scalar_prefetch = 0 : i64, scratch_operands = 1 : i64, tpu.core_type = #tpu.core_type<tc>, window_params = [{transform_indices = @transform_0, window_bounds = array<i64: 2, 32>}, {transform_indices = @transform_1, window_bounds = array<i64: 32, 64>}, {transform_indices = @transform_2, window_bounds = array<i64: 1, 64>}, {transform_indices = @transform_3, window_bounds = array<i64: 2, 64>}]} {
    %c0_i32 = arith.constant 0 : i32
    %0 = arith.cmpi eq, %arg2, %c0_i32 : i32
    %1 = arith.extui %0 : i1 to i32
    %c0_i32_0 = arith.constant 0 : i32
    %2 = arith.cmpi ne, %1, %c0_i32_0 : i32
    scf.if %2 {
      %cst_10 = arith.constant 0.000000e+00 : f32
      %12 = vector.broadcast %cst_10 : f32 to vector<2x64xf32>
      %c0_11 = arith.constant 0 : index
      %c0_12 = arith.constant 0 : index
      %13 = vector.load %arg7[%c0_11, %c0_12] : memref<2x64xf32, #tpu.memory_space<vmem>>, vector<2x64xf32>
      tpu.vector_store %arg7[%c0_11, %c0_12], %12 {strides = array<i32>} : memref<2x64xf32, #tpu.memory_space<vmem>>, vector<2x64xf32>,
    } else {
    }
    %c0 = arith.constant 0 : index
    %c0_1 = arith.constant 0 : index
    %3 = vector.load %arg3[%c0, %c0_1] : memref<2x32xf32, #tpu.memory_space<vmem>>, vector<2x32xf32>
    %c0_2 = arith.constant 0 : index
    %c0_3 = arith.constant 0 : index
    %4 = vector.load %arg7[%c0_2, %c0_3] : memref<2x64xf32, #tpu.memory_space<vmem>>, vector<2x64xf32>
    %c0_4 = arith.constant 0 : index
    %c0_5 = arith.constant 0 : index
    %5 = vector.load %arg4[%c0_4, %c0_5] : memref<32x64xf32, #tpu.memory_space<vmem>>, vector<32x64xf32>
    %cst = arith.constant dense<0.000000e+00> : vector<2x64xf32>
    %6 = tpu.matmul %3, %5, %cst {dimension_numbers = #tpu.dot_dimension_numbers<[1], [0], [0], [1], [0, 0, 1, 1], [], []>} : vector<2x32xf32>, vector<32x64xf32>, vector<2x64xf32> -> vector<2x64xf32>
    %7 = arith.addf %4, %6 : vector<2x64xf32>
    %c0_6 = arith.constant 0 : index
    %c0_7 = arith.constant 0 : index
    %8 = vector.load %arg7[%c0_6, %c0_7] : memref<2x64xf32, #tpu.memory_space<vmem>>, vector<2x64xf32>
    tpu.vector_store %arg7[%c0_6, %c0_7], %7 {strides = array<i32>} : memref<2x64xf32, #tpu.memory_space<vmem>>, vector<2x64xf32>,
    %c0_i32_8 = arith.constant 0 : i32
    %9 = arith.cmpi eq, %arg2, %c0_i32_8 : i32
    %10 = arith.extui %9 : i1 to i32
    %c0_i32_9 = arith.constant 0 : i32
    %11 = arith.cmpi ne, %10, %c0_i32_9 : i32
    scf.if %11 {
      %c0_10 = arith.constant 0 : index
      %c0_11 = arith.constant 0 : index
      %12 = vector.load %arg7[%c0_10, %c0_11] : memref<2x64xf32, #tpu.memory_space<vmem>>, vector<2x64xf32>
      %c0_12 = arith.constant 0 : index
      %c0_13 = arith.constant 0 : index
      %13 = vector.load %arg5[%c0_12, %c0_13] : memref<1x64xf32, #tpu.memory_space<vmem>>, vector<1x64xf32>
      %14 = vector.broadcast %13 : vector<1x64xf32> to vector<2x64xf32>
      %15 = arith.addf %12, %14 : vector<2x64xf32>
      %c0_14 = arith.constant 0 : index
      %c0_15 = arith.constant 0 : index
      %16 = vector.load %arg6[%c0_14, %c0_15] : memref<2x64xf32, #tpu.memory_space<vmem>>, vector<2x64xf32>
      tpu.vector_store %arg6[%c0_14, %c0_15], %15 {strides = array<i32>} : memref<2x64xf32, #tpu.memory_space<vmem>>, vector<2x64xf32>,
    } else {
    }
    return
  }
  func.func @transform_0(%arg0: i32, %arg1: i32, %arg2: i32) -> (i32, i32) {
    %c0_i32 = arith.constant 0 : i32
    return %arg0, %arg2 : i32, i32
  }
  func.func @transform_1(%arg0: i32, %arg1: i32, %arg2: i32) -> (i32, i32) {
    %c0_i32 = arith.constant 0 : i32
    return %arg2, %arg1 : i32, i32
  }
  func.func @transform_2(%arg0: i32, %arg1: i32, %arg2: i32) -> (i32, i32) {
    %c0_i32 = arith.constant 0 : i32
    %c0_i32_0 = arith.constant 0 : i32
    return %c0_i32, %arg1 : i32, i32
  }
  func.func @transform_3(%arg0: i32, %arg1: i32, %arg2: i32) -> (i32, i32) {
    %c0_i32 = arith.constant 0 : i32
    return %arg0, %arg1 : i32, i32
  }
}

</mosaic_0001>

<llo_original>
// kernel: bert_forward.14
$region0: #{bert_forward.14}
  #allocation0 [shape = 'u32[]', space=smem, size = 0x4, offset = 0x4, fixed_abs, tag = 'smem constant byte address 0x4 - core index']
  #allocation1 [shape = 'u32[144,128]{1,0:T(1,128)}', space=vmem, size = 0x12000, scoped, tag = 'internal scratch']
  #allocation2 [shape = 'f32[16,32]{1,0:T(8,128)}', space=vmem, size = 0x2000, scoped, tag = 'scratch operand']
  %s0 = inlined_call_operand.vmem [shape: f32[16,32], index: 0, kind: input, shape index: {}]
  %s1 = inlined_call_operand.vmem [shape: f32[32,32], index: 1, kind: input, shape index: {}]
  %s2 = inlined_call_operand.vmem [shape: f32[1,32], index: 2, kind: input, shape index: {}]
  %s3 = inlined_call_operand.vmem [shape: f32[16,32], index: 3, kind: input, shape index: {}]
  %s4 = inlined_call_operand.vmem [shape: f32[16,32], index: 4, kind: output, shape index: {}]
  %s5 = sld [smem:[#allocation0]]
  $region34: #{bert_forward.14} parent=0
    _
  %s7 = ssub.s32 1, %s5
  %s8 = scalar_select 0, %s7, %s5
  // Predicated region
  $region2: #{bert_forward.14} parent=0 // pred_check
    _
  $region3: #{bert_forward.14} parent=0 // pred_check_branch
    %10 = sbr.rel (0) target = $region5
  $region4: #{bert_forward.14} parent=0 // pred_region
    _
  $region5: #{bert_forward.14} parent=0 // pred_fallthru
    _
  // Predicated region
  $region6: #{bert_forward.14} parent=0 // pred_check
    _
  $region7: #{bert_forward.14} parent=0 // pred_check_branch
    %12 = sbr.rel (0) target = $region9
  $region8: #{bert_forward.14} parent=0 // pred_region
    _
  $region9: #{bert_forward.14} parent=0 // pred_fallthru
    _
  // Predicated region
  $region10: #{bert_forward.14} parent=0 // pred_check
    _
  $region11: #{bert_forward.14} parent=0 // pred_check_branch
    %14 = sbr.rel (0) target = $region13
  $region12: #{bert_forward.14} parent=0 // pred_region
    _
  $region13: #{bert_forward.14} parent=0 // pred_fallthru
    _
  // Predicated region
  $region14: #{bert_forward.14} parent=0 // pred_check
    _
  $region15: #{bert_forward.14} parent=0 // pred_check_branch
    %16 = sbr.rel (0) target = $region17
  $region16: #{bert_forward.14} parent=0 // pred_region
    _
  $region17: #{bert_forward.14} parent=0 // pred_fallthru
    _
  %p17 = scmp.eq.s32.totalorder 0, 0
  // Predicated region
  $region18: #{bert_forward.14} parent=0 // pred_check
    %p18 = pneg %p17
  $region19: #{bert_forward.14} parent=0 // pred_check_branch
    %20 = sbr.rel (%p18) target = $region21
  $region20: #{bert_forward.14} parent=0 // pred_region
    %vm21 = vcmask 261120
    %22 = vst.msk [vmem:[#allocation2] sm:$0xff] %vm21, 0.0
    %23 = vst.msk [vmem:[#allocation2 + $0x8] sm:$0xff] %vm21, 0.0
  $region21: #{bert_forward.14} parent=0 // pred_fallthru
    _
  %v24 = vld [vmem:[%s0] sm:$0xff]
  %v25 = vld [vmem:[%s0 + $0x8] sm:$0xff]
  %v26 = vld [vmem:[#allocation2] sm:$0xff]
  %v27 = vld [vmem:[#allocation2 + $0x8] sm:$0xff]
  %v28 = vld [vmem:[%s1] sm:$0xff]
  %v29 = vld [vmem:[%s1 + $0x8] sm:$0xff]
  %v30 = vld [vmem:[%s1 + $0x10] sm:$0xff]
  %v31 = vld [vmem:[%s1 + $0x18] sm:$0xff]
  %vm32 = vcmask 261120
  %v34 = vsel %vm32, %v24, 0
  %v37 = vsel %vm32, %v25, 0
  %39 = vmatprep.subr.mxu0 0.0
  %40 = vmatpush1.msra.mxu0 %v28
  %41 = vmatprep.subr.mxu0 0.0
  %42 = vmatpush1.msra.mxu0 %v29
  %43 = vmatprep.subr.mxu0 0.0
  %44 = vmatpush1.msra.mxu0 %v30
  %45 = vmatprep.subr.mxu0 0.0
  %46 = vmatpush1.msra.mxu0 %v31
  %47 = vmatprep.subr.mxu0 0.0
  %48 = vmatpush1.msra.mxu0 0.0
  %49 = vmatprep.subr.mxu0 0.0
  %50 = vmatpush1.msra.mxu0 0.0
  %51 = vmatprep.subr.mxu0 0.0
  %52 = vmatpush1.msra.mxu0 0.0
  %53 = vmatprep.subr.mxu0 0.0
  %54 = vmatpush1.msra.mxu0 0.0
  %55 = vmatprep.subr.mxu0 0.0
  %56 = vmatpush1.msra.mxu0 0.0
  %57 = vmatprep.subr.mxu0 0.0
  %58 = vmatpush1.msra.mxu0 0.0
  %59 = vmatprep.subr.mxu0 0.0
  %60 = vmatpush1.msra.mxu0 0.0
  %61 = vmatprep.subr.mxu0 0.0
  %62 = vmatpush1.msra.mxu0 0.0
  %63 = vmatprep.subr.mxu0 0.0
  %64 = vmatpush1.msra.mxu0 0.0
  %65 = vmatprep.subr.mxu0 0.0
  %66 = vmatpush1.msra.mxu0 0.0
  %67 = vmatprep.subr.mxu0 0.0
  %68 = vmatpush1.msra.mxu0 0.0
  %69 = vmatprep.subr.mxu0 0.0
  %70 = vmatpush1.msra.mxu0 0.0
  %71 = vmatprep.subr.mxu0 0.0
  %72 = vmatpush1.msra.mxu0 0.0
  %73 = vmatprep.subr.mxu0 0.0
  %74 = vmatpush1.msra.mxu0 0.0
  %75 = vmatprep.subr.mxu0 0.0
  %76 = vmatpush1.msra.mxu0 0.0
  %77 = vmatprep.subr.mxu0 0.0
  %78 = vmatpush1.msra.mxu0 0.0
  %79 = vmatprep.subr.mxu0 0.0
  %80 = vmatpush1.msra.mxu0 0.0
  %81 = vmatprep.subr.mxu0 0.0
  %82 = vmatpush1.msra.mxu0 0.0
  %83 = vmatprep.subr.mxu0 0.0
  %84 = vmatpush1.msra.mxu0 0.0
  %85 = vmatprep.subr.mxu0 0.0
  %86 = vmatpush1.msra.mxu0 0.0
  %87 = vmatprep.subr.mxu0 0.0
  %88 = vmatpush1.msra.mxu0 0.0
  %89 = vmatprep.subr.mxu0 0.0
  %90 = vmatpush1.msra.mxu0 0.0
  %91 = vmatprep.subr.mxu0 0.0
  %92 = vmatpush1.msra.mxu0 0.0
  %93 = vmatprep.subr.mxu0 0.0
  %94 = vmatpush1.msra.mxu0 0.0
  %95 = vmatprep.subr.mxu0 0.0
  %96 = vmatpush1.msra.mxu0 0.0
  %97 = vmatprep.subr.mxu0 0.0
  %98 = vmatpush1.msra.mxu0 0.0
  %99 = vmatprep.subr.mxu0 0.0
  %100 = vmatpush1.msra.mxu0 0.0
  %101 = vmatprep.subr.mxu0 0.0
  %102 = vmatpush1.msra.mxu0 0.0
  %103 = vmatprep.mubr.f32.mxu0 0.0
  %104 = vmatmul.mubr.f32.gmra.mrb[0].mxu0 %v34
  %v105 = vpop.f32.mrb[0].mxu0
  %v106 = vadd.f32 0.0, %v105
  %v107 = vpop.f32.mrb[0].mxu0
  %108 = vmatprep.mubr.f32.mxu0 0.0
  %109 = vmatmul.mubr.f32.gmra.mrb[0].mxu0 %v37
  %v110 = vpop.f32.mrb[0].mxu0
  %v111 = vadd.f32 0.0, %v110
  %v112 = vpop.f32.mrb[0].mxu0
  %113 = vdwg.mxu0
  %v114 = vadd.f32 %v26, %v106
  %v115 = vadd.f32 %v27, %v111
  %116 = vst.msk [vmem:[#allocation2] sm:$0xff] %vm32, %v114
  %117 = vst.msk [vmem:[#allocation2 + $0x8] sm:$0xff] %vm32, %v115
  // Predicated region
  $region22: #{bert_forward.14} parent=0 // pred_check
    %p118 = pneg %p17
  $region23: #{bert_forward.14} parent=0 // pred_check_branch
    %120 = sbr.rel (%p118) target = $region25
  $region24: #{bert_forward.14} parent=0 // pred_region
    %v121 = vld [vmem:[#allocation2] sm:$0xff]
    %v122 = vld [vmem:[#allocation2 + $0x8] sm:$0xff]
    %v123 = vld [vmem:[%s2] sm:$0x1]
    %v125 = vlaneseq
    %v126 = vshrl.u32 %v125, 7
    %v127 = vsub.s32 0, %v126
    %v128 = vrot.slane %v123, %v127
    %v130 = vadd.f32 %v121, %v128
    %v131 = vadd.f32 %v122, %v128
    %v132 = vld [vmem:[%s3] sm:$0xff]
    %v133 = vld [vmem:[%s3 + $0x8] sm:$0xff]
    %v134 = vadd.f32 %v130, %v132
    %v135 = vadd.f32 %v131, %v133
    %136 = vst.msk [vmem:[%s4] sm:$0xff] %vm32, %v134
    %137 = vst.msk [vmem:[%s4 + $0x8] sm:$0xff] %vm32, %v135
  $region25: #{bert_forward.14} parent=0 // pred_fallthru
    _
  // Predicated region
  $region26: #{bert_forward.14} parent=0 // pred_check
    _
  $region27: #{bert_forward.14} parent=0 // pred_check_branch
    %139 = sbr.rel (0) target = $region29
  $region28: #{bert_forward.14} parent=0 // pred_region
    _
  $region29: #{bert_forward.14} parent=0 // pred_fallthru
    _
  // Predicated region
  $region30: #{bert_forward.14} parent=0 // pred_check
    _
  $region31: #{bert_forward.14} parent=0 // pred_check_branch
    %141 = sbr.rel (0) target = $region33
  $region32: #{bert_forward.14} parent=0 // pred_region
    _
  $region33: #{bert_forward.14} parent=0 // pred_fallthru
    _

// kernel: bert_forward.12
$region0: #{bert_forward.12}
  #allocation0 [shape = 'u32[]', space=smem, size = 0x4, offset = 0x4, fixed_abs, tag = 'smem constant byte address 0x4 - core index']
  #allocation1 [shape = 'u32[144,128]{1,0:T(1,128)}', space=vmem, size = 0x12000, scoped, tag = 'internal scratch']
  #allocation2 [shape = 'f32[16,96]{1,0:T(8,128)}', space=vmem, size = 0x2000, scoped, tag = 'scratch operand']
  %s0 = inlined_call_operand.vmem [shape: f32[16,32], index: 0, kind: input, shape index: {}]
  %s1 = inlined_call_operand.vmem [shape: f32[32,96], index: 1, kind: input, shape index: {}]
  %s2 = inlined_call_operand.vmem [shape: f32[1,96], index: 2, kind: input, shape index: {}]
  %s3 = inlined_call_operand.vmem [shape: f32[1,32], index: 3, kind: input, shape index: {}]
  %s4 = inlined_call_operand.vmem [shape: f32[1,32], index: 4, kind: input, shape index: {}]
  %s5 = inlined_call_operand.vmem [shape: f32[16,96], index: 5, kind: output, shape index: {}]
  %s6 = sld [smem:[#allocation0]]
  $region38: #{bert_forward.12} parent=0
    _
  %s8 = ssub.s32 1, %s6
  %s9 = scalar_select 0, %s8, %s6
  // Predicated region
  $region2: #{bert_forward.12} parent=0 // pred_check
    _
  $region3: #{bert_forward.12} parent=0 // pred_check_branch
    %11 = sbr.rel (0) target = $region5
  $region4: #{bert_forward.12} parent=0 // pred_region
    _
  $region5: #{bert_forward.12} parent=0 // pred_fallthru
    _
  // Predicated region
  $region6: #{bert_forward.12} parent=0 // pred_check
    _
  $region7: #{bert_forward.12} parent=0 // pred_check_branch
    %13 = sbr.rel (0) target = $region9
  $region8: #{bert_forward.12} parent=0 // pred_region
    _
  $region9: #{bert_forward.12} parent=0 // pred_fallthru
    _
  // Predicated region
  $region10: #{bert_forward.12} parent=0 // pred_check
    _
  $region11: #{bert_forward.12} parent=0 // pred_check_branch
    %15 = sbr.rel (0) target = $region13
  $region12: #{bert_forward.12} parent=0 // pred_region
    _
  $region13: #{bert_forward.12} parent=0 // pred_fallthru
    _
  // Predicated region
  $region14: #{bert_forward.12} parent=0 // pred_check
    _
  $region15: #{bert_forward.12} parent=0 // pred_check_branch
    %17 = sbr.rel (0) target = $region17
  $region16: #{bert_forward.12} parent=0 // pred_region
    _
  $region17: #{bert_forward.12} parent=0 // pred_fallthru
    _
  // Predicated region
  $region18: #{bert_forward.12} parent=0 // pred_check
    _
  $region19: #{bert_forward.12} parent=0 // pred_check_branch
    %19 = sbr.rel (0) target = $region21
  $region20: #{bert_forward.12} parent=0 // pred_region
    _
  $region21: #{bert_forward.12} parent=0 // pred_fallthru
    _
  %p20 = scmp.eq.s32.totalorder 0, 0
  // Predicated region
  $region22: #{bert_forward.12} parent=0 // pred_check
    %p21 = pneg %p20
  $region23: #{bert_forward.12} parent=0 // pred_check_branch
    %23 = sbr.rel (%p21) target = $region25
  $region24: #{bert_forward.12} parent=0 // pred_region
    %vm24 = vcmask 785408
    %25 = vst.msk [vmem:[#allocation2] sm:$0xff] %vm24, 0.0
    %26 = vst.msk [vmem:[#allocation2 + $0x8] sm:$0xff] %vm24, 0.0
  $region25: #{bert_forward.12} parent=0 // pred_fallthru
    _
  %v27 = vld [vmem:[%s0] sm:$0xff]
  %v28 = vld [vmem:[%s0 + $0x8] sm:$0xff]
  %vm29 = vcmask 261120
  %v30 = vsel %vm29, %v27, 0.0
  %31 = vadd.xlane.f32.xlu0 %v30
  %v32 = vpop.xlane.xlu0 %31
  %v33 = vsel %vm29, %v28, 0.0
  %34 = vadd.xlane.f32.xlu0 %v33
  %v35 = vpop.xlane.xlu0 %34
  %v36 = vrcp.pop 32.0
  %v37 = vmul.f32 %v32, %v36
  %v38 = vmul.f32 %v35, %v36
  %v39 = vsub.f32 %v27, %v37
  %v40 = vsub.f32 %v28, %v38
  %v41 = vmul.f32 %v39, %v39
  %v42 = vmul.f32 %v40, %v40
  %v43 = vsel %vm29, %v41, 0.0
  %44 = vadd.xlane.f32.xlu0 %v43
  %v45 = vpop.xlane.xlu0 %44
  %v46 = vsel %vm29, %v42, 0.0
  %47 = vadd.xlane.f32.xlu0 %v46
  %v48 = vpop.xlane.xlu0 %47
  %v49 = vmul.f32 %v45, %v36
  %v50 = vmul.f32 %v48, %v36
  %v51 = vadd.f32 %v49, 1e-05
  %v52 = vadd.f32 %v50, 1e-05
  %v53 = vrsqrt.pop %v51
  %v54 = vrsqrt.pop %v52
  %v55 = vmul.f32 %v39, %v53
  %v56 = vmul.f32 %v40, %v54
  %v57 = vld [vmem:[%s3] sm:$0x1]
  %v59 = vlaneseq
  %v60 = vshrl.u32 %v59, 7
  %v61 = vsub.s32 0, %v60
  %v62 = vrot.slane %v57, %v61
  %v64 = vmul.f32 %v55, %v62
  %v65 = vmul.f32 %v56, %v62
  %v66 = vld [vmem:[%s4] sm:$0x1]
  %v68 = vlaneseq
  %v69 = vshrl.u32 %v68, 7
  %v70 = vsub.s32 0, %v69
  %v71 = vrot.slane %v66, %v70
  %v73 = vadd.f32 %v64, %v71
  %v74 = vadd.f32 %v65, %v71
  %v75 = vld [vmem:[#allocation2] sm:$0xff]
  %v76 = vld [vmem:[#allocation2 + $0x8] sm:$0xff]
  %v77 = vld [vmem:[%s1] sm:$0xff]
  %v78 = vld [vmem:[%s1 + $0x8] sm:$0xff]
  %v79 = vld [vmem:[%s1 + $0x10] sm:$0xff]
  %v80 = vld [vmem:[%s1 + $0x18] sm:$0xff]
  %v82 = vsel %vm29, %v73, 0
  %v85 = vsel %vm29, %v74, 0
  %87 = vmatprep.subr.mxu0 0.0
  %88 = vmatpush1.msra.mxu0 %v77
  %89 = vmatprep.subr.mxu0 0.0
  %90 = vmatpush1.msra.mxu0 %v78
  %91 = vmatprep.subr.mxu0 0.0
  %92 = vmatpush1.msra.mxu0 %v79
  %93 = vmatprep.subr.mxu0 0.0
  %94 = vmatpush1.msra.mxu0 %v80
  %95 = vmatprep.subr.mxu0 0.0
  %96 = vmatpush1.msra.mxu0 0.0
  %97 = vmatprep.subr.mxu0 0.0
  %98 = vmatpush1.msra.mxu0 0.0
  %99 = vmatprep.subr.mxu0 0.0
  %100 = vmatpush1.msra.mxu0 0.0
  %101 = vmatprep.subr.mxu0 0.0
  %102 = vmatpush1.msra.mxu0 0.0
  %103 = vmatprep.subr.mxu0 0.0
  %104 = vmatpush1.msra.mxu0 0.0
  %105 = vmatprep.subr.mxu0 0.0
  %106 = vmatpush1.msra.mxu0 0.0
  %107 = vmatprep.subr.mxu0 0.0
  %108 = vmatpush1.msra.mxu0 0.0
  %109 = vmatprep.subr.mxu0 0.0
  %110 = vmatpush1.msra.mxu0 0.0
  %111 = vmatprep.subr.mxu0 0.0
  %112 = vmatpush1.msra.mxu0 0.0
  %113 = vmatprep.subr.mxu0 0.0
  %114 = vmatpush1.msra.mxu0 0.0
  %115 = vmatprep.subr.mxu0 0.0
  %116 = vmatpush1.msra.mxu0 0.0
  %117 = vmatprep.subr.mxu0 0.0
  %118 = vmatpush1.msra.mxu0 0.0
  %119 = vmatprep.subr.mxu0 0.0
  %120 = vmatpush1.msra.mxu0 0.0
  %121 = vmatprep.subr.mxu0 0.0
  %122 = vmatpush1.msra.mxu0 0.0
  %123 = vmatprep.subr.mxu0 0.0
  %124 = vmatpush1.msra.mxu0 0.0
  %125 = vmatprep.subr.mxu0 0.0
  %126 = vmatpush1.msra.mxu0 0.0
  %127 = vmatprep.subr.mxu0 0.0
  %128 = vmatpush1.msra.mxu0 0.0
  %129 = vmatprep.subr.mxu0 0.0
  %130 = vmatpush1.msra.mxu0 0.0
  %131 = vmatprep.subr.mxu0 0.0
  %132 = vmatpush1.msra.mxu0 0.0
  %133 = vmatprep.subr.mxu0 0.0
  %134 = vmatpush1.msra.mxu0 0.0
  %135 = vmatprep.subr.mxu0 0.0
  %136 = vmatpush1.msra.mxu0 0.0
  %137 = vmatprep.subr.mxu0 0.0
  %138 = vmatpush1.msra.mxu0 0.0
  %139 = vmatprep.subr.mxu0 0.0
  %140 = vmatpush1.msra.mxu0 0.0
  %141 = vmatprep.subr.mxu0 0.0
  %142 = vmatpush1.msra.mxu0 0.0
  %143 = vmatprep.subr.mxu0 0.0
  %144 = vmatpush1.msra.mxu0 0.0
  %145 = vmatprep.subr.mxu0 0.0
  %146 = vmatpush1.msra.mxu0 0.0
  %147 = vmatprep.subr.mxu0 0.0
  %148 = vmatpush1.msra.mxu0 0.0
  %149 = vmatprep.subr.mxu0 0.0
  %150 = vmatpush1.msra.mxu0 0.0
  %151 = vmatprep.mubr.f32.mxu0 0.0
  %152 = vmatmul.mubr.f32.gmra.mrb[0].mxu0 %v82
  %v153 = vpop.f32.mrb[0].mxu0
  %v154 = vadd.f32 0.0, %v153
  %v155 = vpop.f32.mrb[0].mxu0
  %156 = vmatprep.mubr.f32.mxu0 0.0
  %157 = vmatmul.mubr.f32.gmra.mrb[0].mxu0 %v85
  %v158 = vpop.f32.mrb[0].mxu0
  %v159 = vadd.f32 0.0, %v158
  %v160 = vpop.f32.mrb[0].mxu0
  %161 = vdwg.mxu0
  %v162 = vadd.f32 %v75, %v154
  %v163 = vadd.f32 %v76, %v159
  %vm164 = vcmask 785408
  %165 = vst.msk [vmem:[#allocation2] sm:$0xff] %vm164, %v162
  %166 = vst.msk [vmem:[#allocation2 + $0x8] sm:$0xff] %vm164, %v163
  // Predicated region
  $region26: #{bert_forward.12} parent=0 // pred_check
    %p167 = pneg %p20
  $region27: #{bert_forward.12} parent=0 // pred_check_branch
    %169 = sbr.rel (%p167) target = $region29
  $region28: #{bert_forward.12} parent=0 // pred_region
    %v170 = vld [vmem:[#allocation2] sm:$0xff]
    %v171 = vld [vmem:[#allocation2 + $0x8] sm:$0xff]
    %v172 = vld [vmem:[%s2] sm:$0x1]
    %v174 = vlaneseq
    %v175 = vshrl.u32 %v174, 7
    %v176 = vsub.s32 0, %v175
    %v177 = vrot.slane %v172, %v176
    %v179 = vadd.f32 %v170, %v177
    %v180 = vadd.f32 %v171, %v177
    %181 = vst.msk [vmem:[%s5] sm:$0xff] %vm164, %v179
    %182 = vst.msk [vmem:[%s5 + $0x8] sm:$0xff] %vm164, %v180
  $region29: #{bert_forward.12} parent=0 // pred_fallthru
    _
  // Predicated region
  $region30: #{bert_forward.12} parent=0 // pred_check
    _
  $region31: #{bert_forward.12} parent=0 // pred_check_branch
    %184 = sbr.rel (0) target = $region33
  $region32: #{bert_forward.12} parent=0 // pred_region
    _
  $region33: #{bert_forward.12} parent=0 // pred_fallthru
    _
  // Predicated region
  $region34: #{bert_forward.12} parent=0 // pred_check
    _
  $region35: #{bert_forward.12} parent=0 // pred_check_branch
    %186 = sbr.rel (0) target = $region37
  $region36: #{bert_forward.12} parent=0 // pred_region
    _
  $region37: #{bert_forward.12} parent=0 // pred_fallthru
    _

// kernel: bert_forward.15
$region0: #{bert_forward.15}
  #allocation0 [shape = 'u32[]', space=smem, size = 0x4, offset = 0x4, fixed_abs, tag = 'smem constant byte address 0x4 - core index']
  #allocation1 [shape = 'u32[144,128]{1,0:T(1,128)}', space=vmem, size = 0x12000, scoped, tag = 'internal scratch']
  #allocation2 [shape = 'f32[16,128]{1,0:T(8,128)}', space=vmem, size = 0x2000, scoped, tag = 'scratch operand']
  %s0 = inlined_call_operand.vmem [shape: f32[16,32], index: 0, kind: input, shape index: {}]
  %s1 = inlined_call_operand.vmem [shape: f32[32,128], index: 1, kind: input, shape index: {}]
  %s2 = inlined_call_operand.vmem [shape: f32[1,128], index: 2, kind: input, shape index: {}]
  %s3 = inlined_call_operand.vmem [shape: f32[1,32], index: 3, kind: input, shape index: {}]
  %s4 = inlined_call_operand.vmem [shape: f32[1,32], index: 4, kind: input, shape index: {}]
  %s5 = inlined_call_operand.vmem [shape: f32[16,128], index: 5, kind: output, shape index: {}]
  %s6 = sld [smem:[#allocation0]]
  $region38: #{bert_forward.15} parent=0
    _
  %s8 = ssub.s32 1, %s6
  %s9 = scalar_select 0, %s8, %s6
  // Predicated region
  $region2: #{bert_forward.15} parent=0 // pred_check
    _
  $region3: #{bert_forward.15} parent=0 // pred_check_branch
    %11 = sbr.rel (0) target = $region5
  $region4: #{bert_forward.15} parent=0 // pred_region
    _
  $region5: #{bert_forward.15} parent=0 // pred_fallthru
    _
  // Predicated region
  $region6: #{bert_forward.15} parent=0 // pred_check
    _
  $region7: #{bert_forward.15} parent=0 // pred_check_branch
    %13 = sbr.rel (0) target = $region9
  $region8: #{bert_forward.15} parent=0 // pred_region
    _
  $region9: #{bert_forward.15} parent=0 // pred_fallthru
    _
  // Predicated region
  $region10: #{bert_forward.15} parent=0 // pred_check
    _
  $region11: #{bert_forward.15} parent=0 // pred_check_branch
    %15 = sbr.rel (0) target = $region13
  $region12: #{bert_forward.15} parent=0 // pred_region
    _
  $region13: #{bert_forward.15} parent=0 // pred_fallthru
    _
  // Predicated region
  $region14: #{bert_forward.15} parent=0 // pred_check
    _
  $region15: #{bert_forward.15} parent=0 // pred_check_branch
    %17 = sbr.rel (0) target = $region17
  $region16: #{bert_forward.15} parent=0 // pred_region
    _
  $region17: #{bert_forward.15} parent=0 // pred_fallthru
    _
  // Predicated region
  $region18: #{bert_forward.15} parent=0 // pred_check
    _
  $region19: #{bert_forward.15} parent=0 // pred_check_branch
    %19 = sbr.rel (0) target = $region21
  $region20: #{bert_forward.15} parent=0 // pred_region
    _
  $region21: #{bert_forward.15} parent=0 // pred_fallthru
    _
  %p20 = scmp.eq.s32.totalorder 0, 0
  // Predicated region
  $region22: #{bert_forward.15} parent=0 // pred_check
    %p21 = pneg %p20
  $region23: #{bert_forward.15} parent=0 // pred_check_branch
    %23 = sbr.rel (%p21) target = $region25
  $region24: #{bert_forward.15} parent=0 // pred_region
    %24 = vst [vmem:[#allocation2] sm:$0xff] 0.0
    %25 = vst [vmem:[#allocation2 + $0x8] sm:$0xff] 0.0
  $region25: #{bert_forward.15} parent=0 // pred_fallthru
    _
  %v26 = vld [vmem:[%s0] sm:$0xff]
  %v27 = vld [vmem:[%s0 + $0x8] sm:$0xff]
  %vm28 = vcmask 261120
  %v29 = vsel %vm28, %v26, 0.0
  %30 = vadd.xlane.f32.xlu0 %v29
  %v31 = vpop.xlane.xlu0 %30
  %v32 = vsel %vm28, %v27, 0.0
  %33 = vadd.xlane.f32.xlu0 %v32
  %v34 = vpop.xlane.xlu0 %33
  %v35 = vrcp.pop 32.0
  %v36 = vmul.f32 %v31, %v35
  %v37 = vmul.f32 %v34, %v35
  %v38 = vsub.f32 %v26, %v36
  %v39 = vsub.f32 %v27, %v37
  %v40 = vmul.f32 %v38, %v38
  %v41 = vmul.f32 %v39, %v39
  %v42 = vsel %vm28, %v40, 0.0
  %43 = vadd.xlane.f32.xlu0 %v42
  %v44 = vpop.xlane.xlu0 %43
  %v45 = vsel %vm28, %v41, 0.0
  %46 = vadd.xlane.f32.xlu0 %v45
  %v47 = vpop.xlane.xlu0 %46
  %v48 = vmul.f32 %v44, %v35
  %v49 = vmul.f32 %v47, %v35
  %v50 = vadd.f32 %v48, 1e-05
  %v51 = vadd.f32 %v49, 1e-05
  %v52 = vrsqrt.pop %v50
  %v53 = vrsqrt.pop %v51
  %v54 = vmul.f32 %v38, %v52
  %v55 = vmul.f32 %v39, %v53
  %v56 = vld [vmem:[%s3] sm:$0x1]
  %v58 = vlaneseq
  %v59 = vshrl.u32 %v58, 7
  %v60 = vsub.s32 0, %v59
  %v61 = vrot.slane %v56, %v60
  %v63 = vmul.f32 %v54, %v61
  %v64 = vmul.f32 %v55, %v61
  %v65 = vld [vmem:[%s4] sm:$0x1]
  %v67 = vlaneseq
  %v68 = vshrl.u32 %v67, 7
  %v69 = vsub.s32 0, %v68
  %v70 = vrot.slane %v65, %v69
  %v72 = vadd.f32 %v63, %v70
  %v73 = vadd.f32 %v64, %v70
  %v74 = vld [vmem:[#allocation2] sm:$0xff]
  %v75 = vld [vmem:[#allocation2 + $0x8] sm:$0xff]
  %v76 = vld [vmem:[%s1] sm:$0xff]
  %v77 = vld [vmem:[%s1 + $0x8] sm:$0xff]
  %v78 = vld [vmem:[%s1 + $0x10] sm:$0xff]
  %v79 = vld [vmem:[%s1 + $0x18] sm:$0xff]
  %v81 = vsel %vm28, %v72, 0
  %v84 = vsel %vm28, %v73, 0
  %86 = vmatprep.subr.mxu0 0.0
  %87 = vmatpush1.msra.mxu0 %v76
  %88 = vmatprep.subr.mxu0 0.0
  %89 = vmatpush1.msra.mxu0 %v77
  %90 = vmatprep.subr.mxu0 0.0
  %91 = vmatpush1.msra.mxu0 %v78
  %92 = vmatprep.subr.mxu0 0.0
  %93 = vmatpush1.msra.mxu0 %v79
  %94 = vmatprep.subr.mxu0 0.0
  %95 = vmatpush1.msra.mxu0 0.0
  %96 = vmatprep.subr.mxu0 0.0
  %97 = vmatpush1.msra.mxu0 0.0
  %98 = vmatprep.subr.mxu0 0.0
  %99 = vmatpush1.msra.mxu0 0.0
  %100 = vmatprep.subr.mxu0 0.0
  %101 = vmatpush1.msra.mxu0 0.0
  %102 = vmatprep.subr.mxu0 0.0
  %103 = vmatpush1.msra.mxu0 0.0
  %104 = vmatprep.subr.mxu0 0.0
  %105 = vmatpush1.msra.mxu0 0.0
  %106 = vmatprep.subr.mxu0 0.0
  %107 = vmatpush1.msra.mxu0 0.0
  %108 = vmatprep.subr.mxu0 0.0
  %109 = vmatpush1.msra.mxu0 0.0
  %110 = vmatprep.subr.mxu0 0.0
  %111 = vmatpush1.msra.mxu0 0.0
  %112 = vmatprep.subr.mxu0 0.0
  %113 = vmatpush1.msra.mxu0 0.0
  %114 = vmatprep.subr.mxu0 0.0
  %115 = vmatpush1.msra.mxu0 0.0
  %116 = vmatprep.subr.mxu0 0.0
  %117 = vmatpush1.msra.mxu0 0.0
  %118 = vmatprep.subr.mxu0 0.0
  %119 = vmatpush1.msra.mxu0 0.0
  %120 = vmatprep.subr.mxu0 0.0
  %121 = vmatpush1.msra.mxu0 0.0
  %122 = vmatprep.subr.mxu0 0.0
  %123 = vmatpush1.msra.mxu0 0.0
  %124 = vmatprep.subr.mxu0 0.0
  %125 = vmatpush1.msra.mxu0 0.0
  %126 = vmatprep.subr.mxu0 0.0
  %127 = vmatpush1.msra.mxu0 0.0
  %128 = vmatprep.subr.mxu0 0.0
  %129 = vmatpush1.msra.mxu0 0.0
  %130 = vmatprep.subr.mxu0 0.0
  %131 = vmatpush1.msra.mxu0 0.0
  %132 = vmatprep.subr.mxu0 0.0
  %133 = vmatpush1.msra.mxu0 0.0
  %134 = vmatprep.subr.mxu0 0.0
  %135 = vmatpush1.msra.mxu0 0.0
  %136 = vmatprep.subr.mxu0 0.0
  %137 = vmatpush1.msra.mxu0 0.0
  %138 = vmatprep.subr.mxu0 0.0
  %139 = vmatpush1.msra.mxu0 0.0
  %140 = vmatprep.subr.mxu0 0.0
  %141 = vmatpush1.msra.mxu0 0.0
  %142 = vmatprep.subr.mxu0 0.0
  %143 = vmatpush1.msra.mxu0 0.0
  %144 = vmatprep.subr.mxu0 0.0
  %145 = vmatpush1.msra.mxu0 0.0
  %146 = vmatprep.subr.mxu0 0.0
  %147 = vmatpush1.msra.mxu0 0.0
  %148 = vmatprep.subr.mxu0 0.0
  %149 = vmatpush1.msra.mxu0 0.0
  %150 = vmatprep.mubr.f32.mxu0 0.0
  %151 = vmatmul.mubr.f32.gmra.mrb[0].mxu0 %v81
  %v152 = vpop.f32.mrb[0].mxu0
  %v153 = vadd.f32 0.0, %v152
  %v154 = vpop.f32.mrb[0].mxu0
  %155 = vmatprep.mubr.f32.mxu0 0.0
  %156 = vmatmul.mubr.f32.gmra.mrb[0].mxu0 %v84
  %v157 = vpop.f32.mrb[0].mxu0
  %v158 = vadd.f32 0.0, %v157
  %v159 = vpop.f32.mrb[0].mxu0
  %160 = vdwg.mxu0
  %v161 = vadd.f32 %v74, %v153
  %v162 = vadd.f32 %v75, %v158
  %163 = vst [vmem:[#allocation2] sm:$0xff] %v161
  %164 = vst [vmem:[#allocation2 + $0x8] sm:$0xff] %v162
  // Predicated region
  $region26: #{bert_forward.15} parent=0 // pred_check
    %p165 = pneg %p20
  $region27: #{bert_forward.15} parent=0 // pred_check_branch
    %167 = sbr.rel (%p165) target = $region29
  $region28: #{bert_forward.15} parent=0 // pred_region
    %v168 = vld [vmem:[#allocation2] sm:$0xff]
    %v169 = vld [vmem:[#allocation2 + $0x8] sm:$0xff]
    %v170 = vld [vmem:[%s2] sm:$0x1]
    %v172 = vlaneseq
    %v173 = vshrl.u32 %v172, 7
    %v174 = vsub.s32 0, %v173
    %v175 = vrot.slane %v170, %v174
    %v177 = vadd.f32 %v168, %v175
    %v178 = vadd.f32 %v169, %v175
    %v179 = vmax.f32 %v177, 0.0
    %v180 = vmax.f32 %v178, 0.0
    %181 = vst [vmem:[%s5] sm:$0xff] %v179
    %182 = vst [vmem:[%s5 + $0x8] sm:$0xff] %v180
  $region29: #{bert_forward.15} parent=0 // pred_fallthru
    _
  // Predicated region
  $region30: #{bert_forward.15} parent=0 // pred_check
    _
  $region31: #{bert_forward.15} parent=0 // pred_check_branch
    %184 = sbr.rel (0) target = $region33
  $region32: #{bert_forward.15} parent=0 // pred_region
    _
  $region33: #{bert_forward.15} parent=0 // pred_fallthru
    _
  // Predicated region
  $region34: #{bert_forward.15} parent=0 // pred_check
    _
  $region35: #{bert_forward.15} parent=0 // pred_check_branch
    %186 = sbr.rel (0) target = $region37
  $region36: #{bert_forward.15} parent=0 // pred_region
    _
  $region37: #{bert_forward.15} parent=0 // pred_fallthru
    _

// kernel: bert_forward.13
$region0: #{bert_forward.13}
  #allocation0 [shape = 'u32[]', space=smem, size = 0x4, offset = 0x4, fixed_abs, tag = 'smem constant byte address 0x4 - core index']
  #allocation1 [shape = 'u32[144,128]{1,0:T(1,128)}', space=vmem, size = 0x12000, scoped, tag = 'internal scratch']
  %s0 = inlined_call_operand.vmem [shape: f32[2,8,96], index: 0, kind: input, shape index: {}]
  %s1 = inlined_call_operand.vmem [shape: f32[2,8,32], index: 1, kind: output, shape index: {}]
  %s2 = sld [smem:[#allocation0]]
  $region37: #{bert_forward.13} parent=0
    _
  %s4 = ssub.s32 1, %s2
  %s5 = scalar_select 0, %s4, %s2
  loop: start=0, step=1, limit=4
  $region2: #{bert_forward.13} parent=0 // loop_pre_header
    _
  $region3: #{bert_forward.13} parent=0 // loop_header
    %s7 = sphi 0, %s11
    %p8 = scmp.ge.s32.totalorder %s7, 4
    %s17 = sphi 0, %s19
    %s20 = sphi 0, %s17
    %s21 = sphi 0, %s20
    %s37 = sphi 0, %s21
    %s43 = sphi 0, %s45
    %s46 = sphi 0, %s43
    %s47 = sphi 0, %s46
    %s63 = sphi 0, %s47
  $region4: #{bert_forward.13} parent=0 // loop_header_branch
    %10 = sbr.rel (%p8) target = $region8
  $region5: #{bert_forward.13} parent=0 // loop_body
    %s12 = ssub.s32 %s7, 1
    %s13 = ssub.s32 %s7, 2
    %s14 = sadd.s32 %s7, 1
    %s15 = ssub.s32 %s7, %s14
    %p16 = scmp.eq.s32.totalorder %s15, 0
    %s18 = sadd.s32 %s17, 1
    %s19 = scalar_select %p16, %s17, %s18
    %p22 = pneg %p16
    %p23 = scmp.eq.s32.totalorder %s7, 1
    %p24 = por %p22, %p23
    %p25 = scmp.ne.s32.totalorder %s17, %s20
    %p26 = scmp.eq.s32.totalorder %s7, 0
    %p27 = por %p25, %p26
    %p28 = scmp.ne.s32.totalorder %s17, %s20
    %p29 = scmp.eq.s32.totalorder %s12, 1
    %p30 = por %p28, %p29
    %p31 = scmp.ne.s32.totalorder %s20, %s21
    %p32 = scmp.eq.s32.totalorder %s12, 0
    %p33 = por %p31, %p32
    %p34 = scmp.ne.s32.totalorder %s20, %s21
    %p35 = scmp.eq.s32.totalorder %s13, 1
    %p36 = por %p34, %p35
    %p38 = scmp.ne.s32.totalorder %s21, %s37
    %p39 = scmp.eq.s32.totalorder %s13, 0
    %p40 = por %p38, %p39
    %s41 = ssub.s32 %s7, %s14
    %p42 = scmp.eq.s32.totalorder %s41, 0
    %s44 = sadd.s32 %s43, 1
    %s45 = scalar_select %p42, %s43, %s44
    %p48 = pneg %p42
    %p49 = scmp.eq.s32.totalorder %s7, 1
    %p50 = por %p48, %p49
    %p51 = scmp.ne.s32.totalorder %s43, %s46
    %p52 = scmp.eq.s32.totalorder %s7, 0
    %p53 = por %p51, %p52
    %p54 = scmp.ne.s32.totalorder %s43, %s46
    %p55 = scmp.eq.s32.totalorder %s12, 1
    %p56 = por %p54, %p55
    %p57 = scmp.ne.s32.totalorder %s46, %s47
    %p58 = scmp.eq.s32.totalorder %s12, 0
    %p59 = por %p57, %p58
    %p60 = scmp.ne.s32.totalorder %s46, %s47
    %p61 = scmp.eq.s32.totalorder %s13, 1
    %p62 = por %p60, %p61
    %p64 = scmp.ne.s32.totalorder %s47, %s63
    %p65 = scmp.eq.s32.totalorder %s13, 0
    %p66 = por %p64, %p65
    %p67 = scmp.le.s32.totalorder 1, %s7
    %p68 = scmp.lt.s32.totalorder %s7, 3
    %p69 = pnand %p67, %p68
    %p70 = pneg %p69
    // Predicated region
    $region9: #{bert_forward.13} parent=5 // pred_check
      _
    $region10: #{bert_forward.13} parent=5 // pred_check_branch
      %72 = sbr.rel (%p69) target = $region12
    $region11: #{bert_forward.13} parent=5 // pred_region
      %s73 = ssub.s32 %s7, 1
    $region12: #{bert_forward.13} parent=5 // pred_fallthru
      _
    %p74 = scmp.lt.s32.totalorder %s7, 2
    // Predicated region
    $region13: #{bert_forward.13} parent=5 // pred_check
      %p75 = pneg %p74
    $region14: #{bert_forward.13} parent=5 // pred_check_branch
      %77 = sbr.rel (%p75) target = $region16
    $region15: #{bert_forward.13} parent=5 // pred_region
      // Predicated region
      $region17: #{bert_forward.13} parent=15 // pred_check
        %p78 = pneg %p27
      $region18: #{bert_forward.13} parent=15 // pred_check_branch
        %80 = sbr.rel (%p78) target = $region20
      $region19: #{bert_forward.13} parent=15 // pred_region
        %p81 = scmp.lt.s32.totalorder %s7, 1
        %s82 = scalar_select %p81, %s7, 1
        %s83 = smul.addr %s82, 8
        %s84 = scalar_lea.vmem %s0, %s83
      $region20: #{bert_forward.13} parent=15 // pred_fallthru
        _
    $region16: #{bert_forward.13} parent=5 // pred_fallthru
      _
    %p85 = scmp.le.s32.totalorder 1, %s7
    %p86 = scmp.lt.s32.totalorder %s7, 3
    %p87 = pnand %p85, %p86
    %p88 = pneg %p87
    // Predicated region
    $region21: #{bert_forward.13} parent=5 // pred_check
      _
    $region22: #{bert_forward.13} parent=5 // pred_check_branch
      %90 = sbr.rel (%p87) target = $region24
    $region23: #{bert_forward.13} parent=5 // pred_region
      %s91 = ssub.s32 %s7, 1
      %p92 = scmp.lt.s32.totalorder %s12, 1
      %s93 = scalar_select %p92, %s12, 1
      %s94 = smul.addr %s93, 8
      %s95 = scalar_lea.vmem %s0, %s94
      %p96 = pneg %p33
      %p97 = pneg %p30
      %p98 = pneg %p59
      %p99 = pneg %p56
      %p100 = scmp.lt.s32.totalorder %s12, 1
      %s101 = scalar_select %p100, %s12, 1
      %s102 = smul.addr %s101, 8
      %s103 = scalar_lea.vmem %s1, %s102
      %p104 = scmp.lt.s32.totalorder %s12, 1
      %s105 = scalar_select %p104, %s12, 1
      %s106 = smul.addr %s105, 8
      %s107 = scalar_lea.vmem %s0, %s106
      %p108 = scmp.lt.s32.totalorder %s12, 1
      %s109 = scalar_select %p108, %s12, 1
      %s110 = smul.addr %s109, 8
      %s111 = scalar_lea.vmem %s1, %s110
      %v112 = vld [vmem:[%s107] sm:$0xff]
      %114 = vrot.lane.b32.xlu0 %v112, 96
      %v115 = vpop.permute.xlu0 %114
      %vm116 = vcmask 64512
      %v117 = vsel %vm116, %v112, 0
      %v119 = vsel %vm116, %v115, 0
      %121 = vmatprep.subr.mxu0 0.0
      %122 = vmatpush1.xpose.msra.mxu0 %v119
      %123 = vmatprep.subr.mxu0 0.0
      %124 = vmatpush1.xpose.msra.mxu0 0.0
      %125 = vmatprep.subr.mxu0 0.0
      %126 = vmatpush1.xpose.msra.mxu0 0.0
      %127 = vmatprep.subr.mxu0 0.0
      %128 = vmatpush1.xpose.msra.mxu0 0.0
      %129 = vmatprep.subr.mxu0 0.0
      %130 = vmatpush1.xpose.msra.mxu0 0.0
      %131 = vmatprep.subr.mxu0 0.0
      %132 = vmatpush1.xpose.msra.mxu0 0.0
      %133 = vmatprep.subr.mxu0 0.0
      %134 = vmatpush1.xpose.msra.mxu0 0.0
      %135 = vmatprep.subr.mxu0 0.0
      %136 = vmatpush1.xpose.msra.mxu0 0.0
      %137 = vmatprep.subr.mxu0 0.0
      %138 = vmatpush1.xpose.msra.mxu0 0.0
      %139 = vmatprep.subr.mxu0 0.0
      %140 = vmatpush1.xpose.msra.mxu0 0.0
      %141 = vmatprep.subr.mxu0 0.0
      %142 = vmatpush1.xpose.msra.mxu0 0.0
      %143 = vmatprep.subr.mxu0 0.0
      %144 = vmatpush1.xpose.msra.mxu0 0.0
      %145 = vmatprep.subr.mxu0 0.0
      %146 = vmatpush1.xpose.msra.mxu0 0.0
      %147 = vmatprep.subr.mxu0 0.0
      %148 = vmatpush1.xpose.msra.mxu0 0.0
      %149 = vmatprep.subr.mxu0 0.0
      %150 = vmatpush1.xpose.msra.mxu0 0.0
      %151 = vmatprep.subr.mxu0 0.0
      %152 = vmatpush1.xpose.msra.mxu0 0.0
      %153 = vmatprep.subr.mxu0 0.0
      %154 = vmatpush1.xpose.msra.mxu0 0.0
      %155 = vmatprep.subr.mxu0 0.0
      %156 = vmatpush1.xpose.msra.mxu0 0.0
      %157 = vmatprep.subr.mxu0 0.0
      %158 = vmatpush1.xpose.msra.mxu0 0.0
      %159 = vmatprep.subr.mxu0 0.0
      %160 = vmatpush1.xpose.msra.mxu0 0.0
      %161 = vmatprep.subr.mxu0 0.0
      %162 = vmatpush1.xpose.msra.mxu0 0.0
      %163 = vmatprep.subr.mxu0 0.0
      %164 = vmatpush1.xpose.msra.mxu0 0.0
      %165 = vmatprep.subr.mxu0 0.0
      %166 = vmatpush1.xpose.msra.mxu0 0.0
      %167 = vmatprep.subr.mxu0 0.0
      %168 = vmatpush1.xpose.msra.mxu0 0.0
      %169 = vmatprep.subr.mxu0 0.0
      %170 = vmatpush1.xpose.msra.mxu0 0.0
      %171 = vmatprep.subr.mxu0 0.0
      %172 = vmatpush1.xpose.msra.mxu0 0.0
      %173 = vmatprep.subr.mxu0 0.0
      %174 = vmatpush1.xpose.msra.mxu0 0.0
      %175 = vmatprep.subr.mxu0 0.0
      %176 = vmatpush1.xpose.msra.mxu0 0.0
      %177 = vmatprep.subr.mxu0 0.0
      %178 = vmatpush1.xpose.msra.mxu0 0.0
      %179 = vmatprep.subr.mxu0 0.0
      %180 = vmatpush1.xpose.msra.mxu0 0.0
      %181 = vmatprep.subr.mxu0 0.0
      %182 = vmatpush1.xpose.msra.mxu0 0.0
      %183 = vmatprep.subr.mxu0 0.0
      %184 = vmatpush1.xpose.msra.mxu0 0.0
      %185 = vmatprep.mubr.f32.mxu0 0.0
      %186 = vmatmul.mubr.f32.gmra.mrb[0].mxu0 %v117
      %v187 = vpop.f32.mrb[0].mxu0
      %v188 = vadd.f32 0.0, %v187
      %v189 = vpop.f32.mrb[0].mxu0
      %190 = vdwg.mxu0
      %v191 = vmul.f32 %v188, 0.35355338
      %v192 = vsel %vm116, %v191, -inf
      %193 = vmax.xlane.f32.xlu0 %v192
      %v194 = vpop.xlane.xlu0 %193
      %v195 = vsub.f32 %v191, %v194
      %v196 = vmul.f32 %v195, 1.442695
      %v197 = vpow.pop %v196
      %v198 = vsel %vm116, %v197, 0.0
      %199 = vadd.xlane.f32.xlu0 %v198
      %v200 = vpop.xlane.xlu0 %199
      %201 = vrot.lane.b32.xlu0 %v112, 64
      %v202 = vpop.permute.xlu0 %201
      %v205 = vsel %vm116, %v197, 0
      %207 = vmatprep.subr.mxu0 0.0
      %208 = vmatpush1.msra.mxu0 %v202
      %209 = vmatprep.subr.mxu0 0.0
      %210 = vmatpush1.msra.mxu0 0.0
      %211 = vmatprep.subr.mxu0 0.0
      %212 = vmatpush1.msra.mxu0 0.0
      %213 = vmatprep.subr.mxu0 0.0
      %214 = vmatpush1.msra.mxu0 0.0
      %215 = vmatprep.subr.mxu0 0.0
      %216 = vmatpush1.msra.mxu0 0.0
      %217 = vmatprep.subr.mxu0 0.0
      %218 = vmatpush1.msra.mxu0 0.0
      %219 = vmatprep.subr.mxu0 0.0
      %220 = vmatpush1.msra.mxu0 0.0
      %221 = vmatprep.subr.mxu0 0.0
      %222 = vmatpush1.msra.mxu0 0.0
      %223 = vmatprep.subr.mxu0 0.0
      %224 = vmatpush1.msra.mxu0 0.0
      %225 = vmatprep.subr.mxu0 0.0
      %226 = vmatpush1.msra.mxu0 0.0
      %227 = vmatprep.subr.mxu0 0.0
      %228 = vmatpush1.msra.mxu0 0.0
      %229 = vmatprep.subr.mxu0 0.0
      %230 = vmatpush1.msra.mxu0 0.0
      %231 = vmatprep.subr.mxu0 0.0
      %232 = vmatpush1.msra.mxu0 0.0
      %233 = vmatprep.subr.mxu0 0.0
      %234 = vmatpush1.msra.mxu0 0.0
      %235 = vmatprep.subr.mxu0 0.0
      %236 = vmatpush1.msra.mxu0 0.0
      %237 = vmatprep.subr.mxu0 0.0
      %238 = vmatpush1.msra.mxu0 0.0
      %239 = vmatprep.subr.mxu0 0.0
      %240 = vmatpush1.msra.mxu0 0.0
      %241 = vmatprep.subr.mxu0 0.0
      %242 = vmatpush1.msra.mxu0 0.0
      %243 = vmatprep.subr.mxu0 0.0
      %244 = vmatpush1.msra.mxu0 0.0
      %245 = vmatprep.subr.mxu0 0.0
      %246 = vmatpush1.msra.mxu0 0.0
      %247 = vmatprep.subr.mxu0 0.0
      %248 = vmatpush1.msra.mxu0 0.0
      %249 = vmatprep.subr.mxu0 0.0
      %250 = vmatpush1.msra.mxu0 0.0
      %251 = vmatprep.subr.mxu0 0.0
      %252 = vmatpush1.msra.mxu0 0.0
      %253 = vmatprep.subr.mxu0 0.0
      %254 = vmatpush1.msra.mxu0 0.0
      %255 = vmatprep.subr.mxu0 0.0
      %256 = vmatpush1.msra.mxu0 0.0
      %257 = vmatprep.subr.mxu0 0.0
      %258 = vmatpush1.msra.mxu0 0.0
      %259 = vmatprep.subr.mxu0 0.0
      %260 = vmatpush1.msra.mxu0 0.0
      %261 = vmatprep.subr.mxu0 0.0
      %262 = vmatpush1.msra.mxu0 0.0
      %263 = vmatprep.subr.mxu0 0.0
      %264 = vmatpush1.msra.mxu0 0.0
      %265 = vmatprep.subr.mxu0 0.0
      %266 = vmatpush1.msra.mxu0 0.0
      %267 = vmatprep.subr.mxu0 0.0
      %268 = vmatpush1.msra.mxu0 0.0
      %269 = vmatprep.subr.mxu0 0.0
      %270 = vmatpush1.msra.mxu0 0.0
      %271 = vmatprep.mubr.f32.mxu0 0.0
      %272 = vmatmul.mubr.f32.gmra.mrb[0].mxu0 %v205
      %v273 = vpop.f32.mrb[0].mxu0
      %v274 = vadd.f32 0.0, %v273
      %v275 = vpop.f32.mrb[0].mxu0
      %276 = vdwg.mxu0
      %v277 = vrcp.pop %v200
      %v278 = vmul.f32 %v274, %v277
      %279 = vrot.lane.b32.xlu0 %v112, 120
      %v280 = vpop.permute.xlu0 %279
      %281 = vrot.lane.b32.xlu0 %v112, 88
      %v282 = vpop.permute.xlu0 %281
      %v283 = vsel %vm116, %v280, 0
      %v285 = vsel %vm116, %v282, 0
      %287 = vmatprep.subr.mxu0 0.0
      %288 = vmatpush1.xpose.msra.mxu0 %v285
      %289 = vmatprep.subr.mxu0 0.0
      %290 = vmatpush1.xpose.msra.mxu0 0.0
      %291 = vmatprep.subr.mxu0 0.0
      %292 = vmatpush1.xpose.msra.mxu0 0.0
      %293 = vmatprep.subr.mxu0 0.0
      %294 = vmatpush1.xpose.msra.mxu0 0.0
      %295 = vmatprep.subr.mxu0 0.0
      %296 = vmatpush1.xpose.msra.mxu0 0.0
      %297 = vmatprep.subr.mxu0 0.0
      %298 = vmatpush1.xpose.msra.mxu0 0.0
      %299 = vmatprep.subr.mxu0 0.0
      %300 = vmatpush1.xpose.msra.mxu0 0.0
      %301 = vmatprep.subr.mxu0 0.0
      %302 = vmatpush1.xpose.msra.mxu0 0.0
      %303 = vmatprep.subr.mxu0 0.0
      %304 = vmatpush1.xpose.msra.mxu0 0.0
      %305 = vmatprep.subr.mxu0 0.0
      %306 = vmatpush1.xpose.msra.mxu0 0.0
      %307 = vmatprep.subr.mxu0 0.0
      %308 = vmatpush1.xpose.msra.mxu0 0.0
      %309 = vmatprep.subr.mxu0 0.0
      %310 = vmatpush1.xpose.msra.mxu0 0.0
      %311 = vmatprep.subr.mxu0 0.0
      %312 = vmatpush1.xpose.msra.mxu0 0.0
      %313 = vmatprep.subr.mxu0 0.0
      %314 = vmatpush1.xpose.msra.mxu0 0.0
      %315 = vmatprep.subr.mxu0 0.0
      %316 = vmatpush1.xpose.msra.mxu0 0.0
      %317 = vmatprep.subr.mxu0 0.0
      %318 = vmatpush1.xpose.msra.mxu0 0.0
      %319 = vmatprep.subr.mxu0 0.0
      %320 = vmatpush1.xpose.msra.mxu0 0.0
      %321 = vmatprep.subr.mxu0 0.0
      %322 = vmatpush1.xpose.msra.mxu0 0.0
      %323 = vmatprep.subr.mxu0 0.0
      %324 = vmatpush1.xpose.msra.mxu0 0.0
      %325 = vmatprep.subr.mxu0 0.0
      %326 = vmatpush1.xpose.msra.mxu0 0.0
      %327 = vmatprep.subr.mxu0 0.0
      %328 = vmatpush1.xpose.msra.mxu0 0.0
      %329 = vmatprep.subr.mxu0 0.0
      %330 = vmatpush1.xpose.msra.mxu0 0.0
      %331 = vmatprep.subr.mxu0 0.0
      %332 = vmatpush1.xpose.msra.mxu0 0.0
      %333 = vmatprep.subr.mxu0 0.0
      %334 = vmatpush1.xpose.msra.mxu0 0.0
      %335 = vmatprep.subr.mxu0 0.0
      %336 = vmatpush1.xpose.msra.mxu0 0.0
      %337 = vmatprep.subr.mxu0 0.0
      %338 = vmatpush1.xpose.msra.mxu0 0.0
      %339 = vmatprep.subr.mxu0 0.0
      %340 = vmatpush1.xpose.msra.mxu0 0.0
      %341 = vmatprep.subr.mxu0 0.0
      %342 = vmatpush1.xpose.msra.mxu0 0.0
      %343 = vmatprep.subr.mxu0 0.0
      %344 = vmatpush1.xpose.msra.mxu0 0.0
      %345 = vmatprep.subr.mxu0 0.0
      %346 = vmatpush1.xpose.msra.mxu0 0.0
      %347 = vmatprep.subr.mxu0 0.0
      %348 = vmatpush1.xpose.msra.mxu0 0.0
      %349 = vmatprep.subr.mxu0 0.0
      %350 = vmatpush1.xpose.msra.mxu0 0.0
      %351 = vmatprep.mubr.f32.mxu0 0.0
      %352 = vmatmul.mubr.f32.gmra.mrb[0].mxu0 %v283
      %v353 = vpop.f32.mrb[0].mxu0
      %v354 = vadd.f32 0.0, %v353
      %v355 = vpop.f32.mrb[0].mxu0
      %356 = vdwg.mxu0
      %v357 = vmul.f32 %v354, 0.35355338
      %v358 = vsel %vm116, %v357, -inf
      %359 = vmax.xlane.f32.xlu0 %v358
      %v360 = vpop.xlane.xlu0 %359
      %v361 = vsub.f32 %v357, %v360
      %v362 = vmul.f32 %v361, 1.442695
      %v363 = vpow.pop %v362
      %v364 = vsel %vm116, %v363, 0.0
      %365 = vadd.xlane.f32.xlu0 %v364
      %v366 = vpop.xlane.xlu0 %365
      %367 = vrot.lane.b32.xlu0 %v112, 56
      %v368 = vpop.permute.xlu0 %367
      %v371 = vsel %vm116, %v363, 0
      %373 = vmatprep.subr.mxu0 0.0
      %374 = vmatpush1.msra.mxu0 %v368
      %375 = vmatprep.subr.mxu0 0.0
      %376 = vmatpush1.msra.mxu0 0.0
      %377 = vmatprep.subr.mxu0 0.0
      %378 = vmatpush1.msra.mxu0 0.0
      %379 = vmatprep.subr.mxu0 0.0
      %380 = vmatpush1.msra.mxu0 0.0
      %381 = vmatprep.subr.mxu0 0.0
      %382 = vmatpush1.msra.mxu0 0.0
      %383 = vmatprep.subr.mxu0 0.0
      %384 = vmatpush1.msra.mxu0 0.0
      %385 = vmatprep.subr.mxu0 0.0
      %386 = vmatpush1.msra.mxu0 0.0
      %387 = vmatprep.subr.mxu0 0.0
      %388 = vmatpush1.msra.mxu0 0.0
      %389 = vmatprep.subr.mxu0 0.0
      %390 = vmatpush1.msra.mxu0 0.0
      %391 = vmatprep.subr.mxu0 0.0
      %392 = vmatpush1.msra.mxu0 0.0
      %393 = vmatprep.subr.mxu0 0.0
      %394 = vmatpush1.msra.mxu0 0.0
      %395 = vmatprep.subr.mxu0 0.0
      %396 = vmatpush1.msra.mxu0 0.0
      %397 = vmatprep.subr.mxu0 0.0
      %398 = vmatpush1.msra.mxu0 0.0
      %399 = vmatprep.subr.mxu0 0.0
      %400 = vmatpush1.msra.mxu0 0.0
      %401 = vmatprep.subr.mxu0 0.0
      %402 = vmatpush1.msra.mxu0 0.0
      %403 = vmatprep.subr.mxu0 0.0
      %404 = vmatpush1.msra.mxu0 0.0
      %405 = vmatprep.subr.mxu0 0.0
      %406 = vmatpush1.msra.mxu0 0.0
      %407 = vmatprep.subr.mxu0 0.0
      %408 = vmatpush1.msra.mxu0 0.0
      %409 = vmatprep.subr.mxu0 0.0
      %410 = vmatpush1.msra.mxu0 0.0
      %411 = vmatprep.subr.mxu0 0.0
      %412 = vmatpush1.msra.mxu0 0.0
      %413 = vmatprep.subr.mxu0 0.0
      %414 = vmatpush1.msra.mxu0 0.0
      %415 = vmatprep.subr.mxu0 0.0
      %416 = vmatpush1.msra.mxu0 0.0
      %417 = vmatprep.subr.mxu0 0.0
      %418 = vmatpush1.msra.mxu0 0.0
      %419 = vmatprep.subr.mxu0 0.0
      %420 = vmatpush1.msra.mxu0 0.0
      %421 = vmatprep.subr.mxu0 0.0
      %422 = vmatpush1.msra.mxu0 0.0
      %423 = vmatprep.subr.mxu0 0.0
      %424 = vmatpush1.msra.mxu0 0.0
      %425 = vmatprep.subr.mxu0 0.0
      %426 = vmatpush1.msra.mxu0 0.0
      %427 = vmatprep.subr.mxu0 0.0
      %428 = vmatpush1.msra.mxu0 0.0
      %429 = vmatprep.subr.mxu0 0.0
      %430 = vmatpush1.msra.mxu0 0.0
      %431 = vmatprep.subr.mxu0 0.0
      %432 = vmatpush1.msra.mxu0 0.0
      %433 = vmatprep.subr.mxu0 0.0
      %434 = vmatpush1.msra.mxu0 0.0
      %435 = vmatprep.subr.mxu0 0.0
      %436 = vmatpush1.msra.mxu0 0.0
      %437 = vmatprep.mubr.f32.mxu0 0.0
      %438 = vmatmul.mubr.f32.gmra.mrb[0].mxu0 %v371
      %v439 = vpop.f32.mrb[0].mxu0
      %v440 = vadd.f32 0.0, %v439
      %v441 = vpop.f32.mrb[0].mxu0
      %442 = vdwg.mxu0
      %v443 = vrcp.pop %v366
      %v444 = vmul.f32 %v440, %v443
      %445 = vrot.lane.b32.xlu0 %v112, 112
      %v446 = vpop.permute.xlu0 %445
      %447 = vrot.lane.b32.xlu0 %v112, 80
      %v448 = vpop.permute.xlu0 %447
      %v449 = vsel %vm116, %v446, 0
      %v451 = vsel %vm116, %v448, 0
      %453 = vmatprep.subr.mxu0 0.0
      %454 = vmatpush1.xpose.msra.mxu0 %v451
      %455 = vmatprep.subr.mxu0 0.0
      %456 = vmatpush1.xpose.msra.mxu0 0.0
      %457 = vmatprep.subr.mxu0 0.0
      %458 = vmatpush1.xpose.msra.mxu0 0.0
      %459 = vmatprep.subr.mxu0 0.0
      %460 = vmatpush1.xpose.msra.mxu0 0.0
      %461 = vmatprep.subr.mxu0 0.0
      %462 = vmatpush1.xpose.msra.mxu0 0.0
      %463 = vmatprep.subr.mxu0 0.0
      %464 = vmatpush1.xpose.msra.mxu0 0.0
      %465 = vmatprep.subr.mxu0 0.0
      %466 = vmatpush1.xpose.msra.mxu0 0.0
      %467 = vmatprep.subr.mxu0 0.0
      %468 = vmatpush1.xpose.msra.mxu0 0.0
      %469 = vmatprep.subr.mxu0 0.0
      %470 = vmatpush1.xpose.msra.mxu0 0.0
      %471 = vmatprep.subr.mxu0 0.0
      %472 = vmatpush1.xpose.msra.mxu0 0.0
      %473 = vmatprep.subr.mxu0 0.0
      %474 = vmatpush1.xpose.msra.mxu0 0.0
      %475 = vmatprep.subr.mxu0 0.0
      %476 = vmatpush1.xpose.msra.mxu0 0.0
      %477 = vmatprep.subr.mxu0 0.0
      %478 = vmatpush1.xpose.msra.mxu0 0.0
      %479 = vmatprep.subr.mxu0 0.0
      %480 = vmatpush1.xpose.msra.mxu0 0.0
      %481 = vmatprep.subr.mxu0 0.0
      %482 = vmatpush1.xpose.msra.mxu0 0.0
      %483 = vmatprep.subr.mxu0 0.0
      %484 = vmatpush1.xpose.msra.mxu0 0.0
      %485 = vmatprep.subr.mxu0 0.0
      %486 = vmatpush1.xpose.msra.mxu0 0.0
      %487 = vmatprep.subr.mxu0 0.0
      %488 = vmatpush1.xpose.msra.mxu0 0.0
      %489 = vmatprep.subr.mxu0 0.0
      %490 = vmatpush1.xpose.msra.mxu0 0.0
      %491 = vmatprep.subr.mxu0 0.0
      %492 = vmatpush1.xpose.msra.mxu0 0.0
      %493 = vmatprep.subr.mxu0 0.0
      %494 = vmatpush1.xpose.msra.mxu0 0.0
      %495 = vmatprep.subr.mxu0 0.0
      %496 = vmatpush1.xpose.msra.mxu0 0.0
      %497 = vmatprep.subr.mxu0 0.0
      %498 = vmatpush1.xpose.msra.mxu0 0.0
      %499 = vmatprep.subr.mxu0 0.0
      %500 = vmatpush1.xpose.msra.mxu0 0.0
      %501 = vmatprep.subr.mxu0 0.0
      %502 = vmatpush1.xpose.msra.mxu0 0.0
      %503 = vmatprep.subr.mxu0 0.0
      %504 = vmatpush1.xpose.msra.mxu0 0.0
      %505 = vmatprep.subr.mxu0 0.0
      %506 = vmatpush1.xpose.msra.mxu0 0.0
      %507 = vmatprep.subr.mxu0 0.0
      %508 = vmatpush1.xpose.msra.mxu0 0.0
      %509 = vmatprep.subr.mxu0 0.0
      %510 = vmatpush1.xpose.msra.mxu0 0.0
      %511 = vmatprep.subr.mxu0 0.0
      %512 = vmatpush1.xpose.msra.mxu0 0.0
      %513 = vmatprep.subr.mxu0 0.0
      %514 = vmatpush1.xpose.msra.mxu0 0.0
      %515 = vmatprep.subr.mxu0 0.0
      %516 = vmatpush1.xpose.msra.mxu0 0.0
      %517 = vmatprep.mubr.f32.mxu0 0.0
      %518 = vmatmul.mubr.f32.gmra.mrb[0].mxu0 %v449
      %v519 = vpop.f32.mrb[0].mxu0
      %v520 = vadd.f32 0.0, %v519
      %v521 = vpop.f32.mrb[0].mxu0
      %522 = vdwg.mxu0
      %v523 = vmul.f32 %v520, 0.35355338
      %v524 = vsel %vm116, %v523, -inf
      %525 = vmax.xlane.f32.xlu0 %v524
      %v526 = vpop.xlane.xlu0 %525
      %v527 = vsub.f32 %v523, %v526
      %v528 = vmul.f32 %v527, 1.442695
      %v529 = vpow.pop %v528
      %v530 = vsel %vm116, %v529, 0.0
      %531 = vadd.xlane.f32.xlu0 %v530
      %v532 = vpop.xlane.xlu0 %531
      %533 = vrot.lane.b32.xlu0 %v112, 48
      %v534 = vpop.permute.xlu0 %533
      %v537 = vsel %vm116, %v529, 0
      %539 = vmatprep.subr.mxu0 0.0
      %540 = vmatpush1.msra.mxu0 %v534
      %541 = vmatprep.subr.mxu0 0.0
      %542 = vmatpush1.msra.mxu0 0.0
      %543 = vmatprep.subr.mxu0 0.0
      %544 = vmatpush1.msra.mxu0 0.0
      %545 = vmatprep.subr.mxu0 0.0
      %546 = vmatpush1.msra.mxu0 0.0
      %547 = vmatprep.subr.mxu0 0.0
      %548 = vmatpush1.msra.mxu0 0.0
      %549 = vmatprep.subr.mxu0 0.0
      %550 = vmatpush1.msra.mxu0 0.0
      %551 = vmatprep.subr.mxu0 0.0
      %552 = vmatpush1.msra.mxu0 0.0
      %553 = vmatprep.subr.mxu0 0.0
      %554 = vmatpush1.msra.mxu0 0.0
      %555 = vmatprep.subr.mxu0 0.0
      %556 = vmatpush1.msra.mxu0 0.0
      %557 = vmatprep.subr.mxu0 0.0
      %558 = vmatpush1.msra.mxu0 0.0
      %559 = vmatprep.subr.mxu0 0.0
      %560 = vmatpush1.msra.mxu0 0.0
      %561 = vmatprep.subr.mxu0 0.0
      %562 = vmatpush1.msra.mxu0 0.0
      %563 = vmatprep.subr.mxu0 0.0
      %564 = vmatpush1.msra.mxu0 0.0
      %565 = vmatprep.subr.mxu0 0.0
      %566 = vmatpush1.msra.mxu0 0.0
      %567 = vmatprep.subr.mxu0 0.0
      %568 = vmatpush1.msra.mxu0 0.0
      %569 = vmatprep.subr.mxu0 0.0
      %570 = vmatpush1.msra.mxu0 0.0
      %571 = vmatprep.subr.mxu0 0.0
      %572 = vmatpush1.msra.mxu0 0.0
      %573 = vmatprep.subr.mxu0 0.0
      %574 = vmatpush1.msra.mxu0 0.0
      %575 = vmatprep.subr.mxu0 0.0
      %576 = vmatpush1.msra.mxu0 0.0
      %577 = vmatprep.subr.mxu0 0.0
      %578 = vmatpush1.msra.mxu0 0.0
      %579 = vmatprep.subr.mxu0 0.0
      %580 = vmatpush1.msra.mxu0 0.0
      %581 = vmatprep.subr.mxu0 0.0
      %582 = vmatpush1.msra.mxu0 0.0
      %583 = vmatprep.subr.mxu0 0.0
      %584 = vmatpush1.msra.mxu0 0.0
      %585 = vmatprep.subr.mxu0 0.0
      %586 = vmatpush1.msra.mxu0 0.0
      %587 = vmatprep.subr.mxu0 0.0
      %588 = vmatpush1.msra.mxu0 0.0
      %589 = vmatprep.subr.mxu0 0.0
      %590 = vmatpush1.msra.mxu0 0.0
      %591 = vmatprep.subr.mxu0 0.0
      %592 = vmatpush1.msra.mxu0 0.0
      %593 = vmatprep.subr.mxu0 0.0
      %594 = vmatpush1.msra.mxu0 0.0
      %595 = vmatprep.subr.mxu0 0.0
      %596 = vmatpush1.msra.mxu0 0.0
      %597 = vmatprep.subr.mxu0 0.0
      %598 = vmatpush1.msra.mxu0 0.0
      %599 = vmatprep.subr.mxu0 0.0
      %600 = vmatpush1.msra.mxu0 0.0
      %601 = vmatprep.subr.mxu0 0.0
      %602 = vmatpush1.msra.mxu0 0.0
      %603 = vmatprep.mubr.f32.mxu0 0.0
      %604 = vmatmul.mubr.f32.gmra.mrb[0].mxu0 %v537
      %v605 = vpop.f32.mrb[0].mxu0
      %v606 = vadd.f32 0.0, %v605
      %v607 = vpop.f32.mrb[0].mxu0
      %608 = vdwg.mxu0
      %v609 = vrcp.pop %v532
      %v610 = vmul.f32 %v606, %v609
      %611 = vrot.lane.b32.xlu0 %v112, 104
      %v612 = vpop.permute.xlu0 %611
      %613 = vrot.lane.b32.xlu0 %v112, 72
      %v614 = vpop.permute.xlu0 %613
      %v615 = vsel %vm116, %v612, 0
      %v617 = vsel %vm116, %v614, 0
      %619 = vmatprep.subr.mxu0 0.0
      %620 = vmatpush1.xpose.msra.mxu0 %v617
      %621 = vmatprep.subr.mxu0 0.0
      %622 = vmatpush1.xpose.msra.mxu0 0.0
      %623 = vmatprep.subr.mxu0 0.0
      %624 = vmatpush1.xpose.msra.mxu0 0.0
      %625 = vmatprep.subr.mxu0 0.0
      %626 = vmatpush1.xpose.msra.mxu0 0.0
      %627 = vmatprep.subr.mxu0 0.0
      %628 = vmatpush1.xpose.msra.mxu0 0.0
      %629 = vmatprep.subr.mxu0 0.0
      %630 = vmatpush1.xpose.msra.mxu0 0.0
      %631 = vmatprep.subr.mxu0 0.0
      %632 = vmatpush1.xpose.msra.mxu0 0.0
      %633 = vmatprep.subr.mxu0 0.0
      %634 = vmatpush1.xpose.msra.mxu0 0.0
      %635 = vmatprep.subr.mxu0 0.0
      %636 = vmatpush1.xpose.msra.mxu0 0.0
      %637 = vmatprep.subr.mxu0 0.0
      %638 = vmatpush1.xpose.msra.mxu0 0.0
      %639 = vmatprep.subr.mxu0 0.0
      %640 = vmatpush1.xpose.msra.mxu0 0.0
      %641 = vmatprep.subr.mxu0 0.0
      %642 = vmatpush1.xpose.msra.mxu0 0.0
      %643 = vmatprep.subr.mxu0 0.0
      %644 = vmatpush1.xpose.msra.mxu0 0.0
      %645 = vmatprep.subr.mxu0 0.0
      %646 = vmatpush1.xpose.msra.mxu0 0.0
      %647 = vmatprep.subr.mxu0 0.0
      %648 = vmatpush1.xpose.msra.mxu0 0.0
      %649 = vmatprep.subr.mxu0 0.0
      %650 = vmatpush1.xpose.msra.mxu0 0.0
      %651 = vmatprep.subr.mxu0 0.0
      %652 = vmatpush1.xpose.msra.mxu0 0.0
      %653 = vmatprep.subr.mxu0 0.0
      %654 = vmatpush1.xpose.msra.mxu0 0.0
      %655 = vmatprep.subr.mxu0 0.0
      %656 = vmatpush1.xpose.msra.mxu0 0.0
      %657 = vmatprep.subr.mxu0 0.0
      %658 = vmatpush1.xpose.msra.mxu0 0.0
      %659 = vmatprep.subr.mxu0 0.0
      %660 = vmatpush1.xpose.msra.mxu0 0.0
      %661 = vmatprep.subr.mxu0 0.0
      %662 = vmatpush1.xpose.msra.mxu0 0.0
      %663 = vmatprep.subr.mxu0 0.0
      %664 = vmatpush1.xpose.msra.mxu0 0.0
      %665 = vmatprep.subr.mxu0 0.0
      %666 = vmatpush1.xpose.msra.mxu0 0.0
      %667 = vmatprep.subr.mxu0 0.0
      %668 = vmatpush1.xpose.msra.mxu0 0.0
      %669 = vmatprep.subr.mxu0 0.0
      %670 = vmatpush1.xpose.msra.mxu0 0.0
      %671 = vmatprep.subr.mxu0 0.0
      %672 = vmatpush1.xpose.msra.mxu0 0.0
      %673 = vmatprep.subr.mxu0 0.0
      %674 = vmatpush1.xpose.msra.mxu0 0.0
      %675 = vmatprep.subr.mxu0 0.0
      %676 = vmatpush1.xpose.msra.mxu0 0.0
      %677 = vmatprep.subr.mxu0 0.0
      %678 = vmatpush1.xpose.msra.mxu0 0.0
      %679 = vmatprep.subr.mxu0 0.0
      %680 = vmatpush1.xpose.msra.mxu0 0.0
      %681 = vmatprep.subr.mxu0 0.0
      %682 = vmatpush1.xpose.msra.mxu0 0.0
      %683 = vmatprep.mubr.f32.mxu0 0.0
      %684 = vmatmul.mubr.f32.gmra.mrb[0].mxu0 %v615
      %v685 = vpop.f32.mrb[0].mxu0
      %v686 = vadd.f32 0.0, %v685
      %v687 = vpop.f32.mrb[0].mxu0
      %688 = vdwg.mxu0
      %v689 = vmul.f32 %v686, 0.35355338
      %v690 = vsel %vm116, %v689, -inf
      %691 = vmax.xlane.f32.xlu0 %v690
      %v692 = vpop.xlane.xlu0 %691
      %v693 = vsub.f32 %v689, %v692
      %v694 = vmul.f32 %v693, 1.442695
      %v695 = vpow.pop %v694
      %v696 = vsel %vm116, %v695, 0.0
      %697 = vadd.xlane.f32.xlu0 %v696
      %v698 = vpop.xlane.xlu0 %697
      %699 = vrot.lane.b32.xlu0 %v112, 40
      %v700 = vpop.permute.xlu0 %699
      %v703 = vsel %vm116, %v695, 0
      %705 = vmatprep.subr.mxu0 0.0
      %706 = vmatpush1.msra.mxu0 %v700
      %707 = vmatprep.subr.mxu0 0.0
      %708 = vmatpush1.msra.mxu0 0.0
      %709 = vmatprep.subr.mxu0 0.0
      %710 = vmatpush1.msra.mxu0 0.0
      %711 = vmatprep.subr.mxu0 0.0
      %712 = vmatpush1.msra.mxu0 0.0
      %713 = vmatprep.subr.mxu0 0.0
      %714 = vmatpush1.msra.mxu0 0.0
      %715 = vmatprep.subr.mxu0 0.0
      %716 = vmatpush1.msra.mxu0 0.0
      %717 = vmatprep.subr.mxu0 0.0
      %718 = vmatpush1.msra.mxu0 0.0
      %719 = vmatprep.subr.mxu0 0.0
      %720 = vmatpush1.msra.mxu0 0.0
      %721 = vmatprep.subr.mxu0 0.0
      %722 = vmatpush1.msra.mxu0 0.0
      %723 = vmatprep.subr.mxu0 0.0
      %724 = vmatpush1.msra.mxu0 0.0
      %725 = vmatprep.subr.mxu0 0.0
      %726 = vmatpush1.msra.mxu0 0.0
      %727 = vmatprep.subr.mxu0 0.0
      %728 = vmatpush1.msra.mxu0 0.0
      %729 = vmatprep.subr.mxu0 0.0
      %730 = vmatpush1.msra.mxu0 0.0
      %731 = vmatprep.subr.mxu0 0.0
      %732 = vmatpush1.msra.mxu0 0.0
      %733 = vmatprep.subr.mxu0 0.0
      %734 = vmatpush1.msra.mxu0 0.0
      %735 = vmatprep.subr.mxu0 0.0
      %736 = vmatpush1.msra.mxu0 0.0
      %737 = vmatprep.subr.mxu0 0.0
      %738 = vmatpush1.msra.mxu0 0.0
      %739 = vmatprep.subr.mxu0 0.0
      %740 = vmatpush1.msra.mxu0 0.0
      %741 = vmatprep.subr.mxu0 0.0
      %742 = vmatpush1.msra.mxu0 0.0
      %743 = vmatprep.subr.mxu0 0.0
      %744 = vmatpush1.msra.mxu0 0.0
      %745 = vmatprep.subr.mxu0 0.0
      %746 = vmatpush1.msra.mxu0 0.0
      %747 = vmatprep.subr.mxu0 0.0
      %748 = vmatpush1.msra.mxu0 0.0
      %749 = vmatprep.subr.mxu0 0.0
      %750 = vmatpush1.msra.mxu0 0.0
      %751 = vmatprep.subr.mxu0 0.0
      %752 = vmatpush1.msra.mxu0 0.0
      %753 = vmatprep.subr.mxu0 0.0
      %754 = vmatpush1.msra.mxu0 0.0
      %755 = vmatprep.subr.mxu0 0.0
      %756 = vmatpush1.msra.mxu0 0.0
      %757 = vmatprep.subr.mxu0 0.0
      %758 = vmatpush1.msra.mxu0 0.0
      %759 = vmatprep.subr.mxu0 0.0
      %760 = vmatpush1.msra.mxu0 0.0
      %761 = vmatprep.subr.mxu0 0.0
      %762 = vmatpush1.msra.mxu0 0.0
      %763 = vmatprep.subr.mxu0 0.0
      %764 = vmatpush1.msra.mxu0 0.0
      %765 = vmatprep.subr.mxu0 0.0
      %766 = vmatpush1.msra.mxu0 0.0
      %767 = vmatprep.subr.mxu0 0.0
      %768 = vmatpush1.msra.mxu0 0.0
      %769 = vmatprep.mubr.f32.mxu0 0.0
      %770 = vmatmul.mubr.f32.gmra.mrb[0].mxu0 %v703
      %v771 = vpop.f32.mrb[0].mxu0
      %v772 = vadd.f32 0.0, %v771
      %v773 = vpop.f32.mrb[0].mxu0
      %774 = vdwg.mxu0
      %v775 = vrcp.pop %v698
      %v776 = vmul.f32 %v772, %v775
      %778 = vrot.lane.b32.xlu0 %v444, 8
      %v779 = vpop.permute.xlu0 %778
      %782 = vrot.lane.b32.xlu0 %v610, 16
      %v783 = vpop.permute.xlu0 %782
      %786 = vrot.lane.b32.xlu0 %v776, 24
      %v787 = vpop.permute.xlu0 %786
      %v789 = vsel %vm116, %v278, %v779
      %vm790 = vcmask 130048
      %v791 = vsel %vm790, %v789, %v783
      %vm792 = vcmask 195584
      %v793 = vsel %vm792, %v791, %v787
      %vm794 = vcmask 261120
      %795 = vst.msk [vmem:[%s111] sm:$0xff] %vm794, %v793
      %p796 = scmp.lt.s32.totalorder %s12, 1
      %s797 = scalar_select %p796, %s12, 1
      %s798 = smul.addr %s797, 8
      %s799 = scalar_lea.vmem %s1, %s798
      // Predicated region
      $region25: #{bert_forward.13} parent=23 // pred_check
        %p800 = pneg %p56
      $region26: #{bert_forward.13} parent=23 // pred_check_branch
        %802 = sbr.rel (%p800) target = $region28
      $region27: #{bert_forward.13} parent=23 // pred_region
        _
      $region28: #{bert_forward.13} parent=23 // pred_fallthru
        _
    $region24: #{bert_forward.13} parent=5 // pred_fallthru
      _
    %p803 = scmp.le.s32.totalorder 2, %s7
    // Predicated region
    $region29: #{bert_forward.13} parent=5 // pred_check
      %p804 = pneg %p803
    $region30: #{bert_forward.13} parent=5 // pred_check_branch
      %806 = sbr.rel (%p804) target = $region32
    $region31: #{bert_forward.13} parent=5 // pred_region
      %s807 = ssub.s32 %s7, 2
      // Predicated region
      $region33: #{bert_forward.13} parent=31 // pred_check
        %p808 = pneg %p62
      $region34: #{bert_forward.13} parent=31 // pred_check_branch
        %810 = sbr.rel (%p808) target = $region36
      $region35: #{bert_forward.13} parent=31 // pred_region
        %p811 = scmp.lt.s32.totalorder %s13, 1
        %s812 = scalar_select %p811, %s13, 1
        %s813 = smul.addr %s812, 8
        %s814 = scalar_lea.vmem %s1, %s813
      $region36: #{bert_forward.13} parent=31 // pred_fallthru
        _
    $region32: #{bert_forward.13} parent=5 // pred_fallthru
      _
  $region6: #{bert_forward.13} parent=0 // loop_footer
    %s11 = sadd.s32 1, %s7
  $region7: #{bert_forward.13} parent=0 // loop_footer_branch
    %6 = sbr.rel target = $region3
  $region8: #{bert_forward.13} parent=0 // loop_exit
    _

// kernel: bert_forward.22
$region0: #{bert_forward.22}
  #allocation0 [shape = 'u32[]', space=smem, size = 0x4, offset = 0x4, fixed_abs, tag = 'smem constant byte address 0x4 - core index']
  #allocation1 [shape = 'u32[144,128]{1,0:T(1,128)}', space=vmem, size = 0x12000, scoped, tag = 'internal scratch']
  %s0 = inlined_call_operand.vmem [shape: f32[2,8,32], index: 0, kind: input, shape index: {}]
  %s1 = inlined_call_operand.vmem [shape: f32[1,32], index: 1, kind: input, shape index: {}]
  %s2 = inlined_call_operand.vmem [shape: f32[1,32], index: 2, kind: input, shape index: {}]
  %s3 = inlined_call_operand.vmem [shape: f32[2,1,32], index: 3, kind: output, shape index: {}]
  %s4 = sld [smem:[#allocation0]]
  $region45: #{bert_forward.22} parent=0
    _
  %s6 = ssub.s32 1, %s4
  %s7 = scalar_select 0, %s6, %s4
  loop: start=0, step=1, limit=4
  $region2: #{bert_forward.22} parent=0 // loop_pre_header
    _
  $region3: #{bert_forward.22} parent=0 // loop_header
    %s9 = sphi 0, %s13
    %p10 = scmp.ge.s32.totalorder %s9, 4
    %s19 = sphi 0, %s21
    %s22 = sphi 0, %s19
    %s23 = sphi 0, %s22
    %s39 = sphi 0, %s23
    %s43 = sphi 0, %s43
    %s45 = sphi 0, %s43
    %s46 = sphi 0, %s45
    %s60 = sphi 0, %s46
    %s64 = sphi 0, %s64
    %s66 = sphi 0, %s64
    %s67 = sphi 0, %s66
    %s81 = sphi 0, %s67
    %s87 = sphi 0, %s89
    %s90 = sphi 0, %s87
    %s91 = sphi 0, %s90
    %s107 = sphi 0, %s91
  $region4: #{bert_forward.22} parent=0 // loop_header_branch
    %12 = sbr.rel (%p10) target = $region8
  $region5: #{bert_forward.22} parent=0 // loop_body
    %s14 = ssub.s32 %s9, 1
    %s15 = ssub.s32 %s9, 2
    %s16 = sadd.s32 %s9, 1
    %s17 = ssub.s32 %s9, %s16
    %p18 = scmp.eq.s32.totalorder %s17, 0
    %s20 = sadd.s32 %s19, 1
    %s21 = scalar_select %p18, %s19, %s20
    %p24 = pneg %p18
    %p25 = scmp.eq.s32.totalorder %s9, 1
    %p26 = por %p24, %p25
    %p27 = scmp.ne.s32.totalorder %s19, %s22
    %p28 = scmp.eq.s32.totalorder %s9, 0
    %p29 = por %p27, %p28
    %p30 = scmp.ne.s32.totalorder %s19, %s22
    %p31 = scmp.eq.s32.totalorder %s14, 1
    %p32 = por %p30, %p31
    %p33 = scmp.ne.s32.totalorder %s22, %s23
    %p34 = scmp.eq.s32.totalorder %s14, 0
    %p35 = por %p33, %p34
    %p36 = scmp.ne.s32.totalorder %s22, %s23
    %p37 = scmp.eq.s32.totalorder %s15, 1
    %p38 = por %p36, %p37
    %p40 = scmp.ne.s32.totalorder %s23, %s39
    %p41 = scmp.eq.s32.totalorder %s15, 0
    %p42 = por %p40, %p41
    %s44 = sadd.s32 %s43, 1
    %p47 = scmp.eq.s32.totalorder %s9, 1
    %p48 = scmp.ne.s32.totalorder %s43, %s45
    %p49 = scmp.eq.s32.totalorder %s9, 0
    %p50 = por %p48, %p49
    %p51 = scmp.ne.s32.totalorder %s43, %s45
    %p52 = scmp.eq.s32.totalorder %s14, 1
    %p53 = por %p51, %p52
    %p54 = scmp.ne.s32.totalorder %s45, %s46
    %p55 = scmp.eq.s32.totalorder %s14, 0
    %p56 = por %p54, %p55
    %p57 = scmp.ne.s32.totalorder %s45, %s46
    %p58 = scmp.eq.s32.totalorder %s15, 1
    %p59 = por %p57, %p58
    %p61 = scmp.ne.s32.totalorder %s46, %s60
    %p62 = scmp.eq.s32.totalorder %s15, 0
    %p63 = por %p61, %p62
    %s65 = sadd.s32 %s64, 1
    %p68 = scmp.eq.s32.totalorder %s9, 1
    %p69 = scmp.ne.s32.totalorder %s64, %s66
    %p70 = scmp.eq.s32.totalorder %s9, 0
    %p71 = por %p69, %p70
    %p72 = scmp.ne.s32.totalorder %s64, %s66
    %p73 = scmp.eq.s32.totalorder %s14, 1
    %p74 = por %p72, %p73
    %p75 = scmp.ne.s32.totalorder %s66, %s67
    %p76 = scmp.eq.s32.totalorder %s14, 0
    %p77 = por %p75, %p76
    %p78 = scmp.ne.s32.totalorder %s66, %s67
    %p79 = scmp.eq.s32.totalorder %s15, 1
    %p80 = por %p78, %p79
    %p82 = scmp.ne.s32.totalorder %s67, %s81
    %p83 = scmp.eq.s32.totalorder %s15, 0
    %p84 = por %p82, %p83
    %s85 = ssub.s32 %s9, %s16
    %p86 = scmp.eq.s32.totalorder %s85, 0
    %s88 = sadd.s32 %s87, 1
    %s89 = scalar_select %p86, %s87, %s88
    %p92 = pneg %p86
    %p93 = scmp.eq.s32.totalorder %s9, 1
    %p94 = por %p92, %p93
    %p95 = scmp.ne.s32.totalorder %s87, %s90
    %p96 = scmp.eq.s32.totalorder %s9, 0
    %p97 = por %p95, %p96
    %p98 = scmp.ne.s32.totalorder %s87, %s90
    %p99 = scmp.eq.s32.totalorder %s14, 1
    %p100 = por %p98, %p99
    %p101 = scmp.ne.s32.totalorder %s90, %s91
    %p102 = scmp.eq.s32.totalorder %s14, 0
    %p103 = por %p101, %p102
    %p104 = scmp.ne.s32.totalorder %s90, %s91
    %p105 = scmp.eq.s32.totalorder %s15, 1
    %p106 = por %p104, %p105
    %p108 = scmp.ne.s32.totalorder %s91, %s107
    %p109 = scmp.eq.s32.totalorder %s15, 0
    %p110 = por %p108, %p109
    %p111 = scmp.le.s32.totalorder 1, %s9
    %p112 = scmp.lt.s32.totalorder %s9, 3
    %p113 = pnand %p111, %p112
    %p114 = pneg %p113
    // Predicated region
    $region9: #{bert_forward.22} parent=5 // pred_check
      _
    $region10: #{bert_forward.22} parent=5 // pred_check_branch
      %116 = sbr.rel (%p113) target = $region12
    $region11: #{bert_forward.22} parent=5 // pred_region
      %s117 = ssub.s32 %s9, 1
      // Predicated region
      $region13: #{bert_forward.22} parent=11 // pred_check
        %p118 = pneg %p56
      $region14: #{bert_forward.22} parent=11 // pred_check_branch
        %120 = sbr.rel (%p118) target = $region16
      $region15: #{bert_forward.22} parent=11 // pred_region
        _
      $region16: #{bert_forward.22} parent=11 // pred_fallthru
        _
      // Predicated region
      $region17: #{bert_forward.22} parent=11 // pred_check
        %p121 = pneg %p77
      $region18: #{bert_forward.22} parent=11 // pred_check_branch
        %123 = sbr.rel (%p121) target = $region20
      $region19: #{bert_forward.22} parent=11 // pred_region
        _
      $region20: #{bert_forward.22} parent=11 // pred_fallthru
        _
    $region12: #{bert_forward.22} parent=5 // pred_fallthru
      _
    %p124 = scmp.lt.s32.totalorder %s9, 2
    // Predicated region
    $region21: #{bert_forward.22} parent=5 // pred_check
      %p125 = pneg %p124
    $region22: #{bert_forward.22} parent=5 // pred_check_branch
      %127 = sbr.rel (%p125) target = $region24
    $region23: #{bert_forward.22} parent=5 // pred_region
      // Predicated region
      $region25: #{bert_forward.22} parent=23 // pred_check
        %p128 = pneg %p29
      $region26: #{bert_forward.22} parent=23 // pred_check_branch
        %130 = sbr.rel (%p128) target = $region28
      $region27: #{bert_forward.22} parent=23 // pred_region
        %p131 = scmp.lt.s32.totalorder %s9, 1
        %s132 = scalar_select %p131, %s9, 1
        %s133 = smul.addr %s132, 8
        %s134 = scalar_lea.vmem %s0, %s133
      $region28: #{bert_forward.22} parent=23 // pred_fallthru
        _
    $region24: #{bert_forward.22} parent=5 // pred_fallthru
      _
    %p135 = scmp.le.s32.totalorder 1, %s9
    %p136 = scmp.lt.s32.totalorder %s9, 3
    %p137 = pnand %p135, %p136
    %p138 = pneg %p137
    // Predicated region
    $region29: #{bert_forward.22} parent=5 // pred_check
      _
    $region30: #{bert_forward.22} parent=5 // pred_check_branch
      %140 = sbr.rel (%p137) target = $region32
    $region31: #{bert_forward.22} parent=5 // pred_region
      %s141 = ssub.s32 %s9, 1
      %p142 = scmp.lt.s32.totalorder %s14, 1
      %s143 = scalar_select %p142, %s14, 1
      %s144 = smul.addr %s143, 8
      %s145 = scalar_lea.vmem %s0, %s144
      %p146 = pneg %p35
      %p147 = pneg %p32
      %p148 = pneg %p56
      %p149 = pneg %p53
      %p150 = pneg %p77
      %p151 = pneg %p74
      %p152 = pneg %p103
      %p153 = pneg %p100
      %p154 = scmp.lt.s32.totalorder %s14, 1
      %s155 = scalar_select %p154, %s14, 1
      %s156 = scalar_lea.vmem %s3, %s155
      %p157 = scmp.lt.s32.totalorder %s14, 1
      %s158 = scalar_select %p157, %s14, 1
      %s159 = smul.addr %s158, 8
      %s160 = scalar_lea.vmem %s0, %s159
      %p161 = scmp.lt.s32.totalorder %s14, 1
      %s162 = scalar_select %p161, %s14, 1
      %s163 = scalar_lea.vmem %s3, %s162
      %v164 = vld [vmem:[%s160] sm:$0xff]
      %vm165 = vcmask 261120
      %v166 = vsel %vm165, %v164, 0.0
      %167 = vadd.xlane.f32.xlu0 %v166
      %v168 = vpop.xlane.xlu0 %167
      %v169 = vrcp.pop 32.0
      %v170 = vmul.f32 %v168, %v169
      %v171 = vsub.f32 %v164, %v170
      %v172 = vmul.f32 %v171, %v171
      %v173 = vsel %vm165, %v172, 0.0
      %174 = vadd.xlane.f32.xlu0 %v173
      %v175 = vpop.xlane.xlu0 %174
      %v176 = vmul.f32 %v175, %v169
      %v177 = vadd.f32 %v176, 1e-05
      %v178 = vrsqrt.pop %v177
      %v179 = vmul.f32 %v171, %v178
      %v180 = vld [vmem:[%s1] sm:$0x1]
      %v182 = vlaneseq
      %v183 = vshrl.u32 %v182, 7
      %v184 = vsub.s32 0, %v183
      %v185 = vrot.slane %v180, %v184
      %v187 = vmul.f32 %v179, %v185
      %v188 = vld [vmem:[%s2] sm:$0x1]
      %v190 = vlaneseq
      %v191 = vshrl.u32 %v190, 7
      %v192 = vsub.s32 0, %v191
      %v193 = vrot.slane %v188, %v192
      %v195 = vadd.f32 %v187, %v193
      %v196 = vsel %vm165, %v195, 0.0
      %v197 = vrot.slane %v196, 4
      %v198 = vadd.f32 %v196, %v197
      %v199 = vrot.slane %v198, 2
      %v200 = vadd.f32 %v198, %v199
      %v201 = vrot.slane %v200, 1
      %v202 = vadd.f32 %v200, %v201
      %v203 = vrcp.pop 8.0
      %v204 = vmul.f32 %v202, %v203
      %vm205 = vcmask 253952
      %206 = vst.msk [vmem:[%s163] sm:$0x1] %vm205, %v204
      %p207 = scmp.lt.s32.totalorder %s14, 1
      %s208 = scalar_select %p207, %s14, 1
      %s209 = scalar_lea.vmem %s3, %s208
      // Predicated region
      $region33: #{bert_forward.22} parent=31 // pred_check
        %p210 = pneg %p100
      $region34: #{bert_forward.22} parent=31 // pred_check_branch
        %212 = sbr.rel (%p210) target = $region36
      $region35: #{bert_forward.22} parent=31 // pred_region
        _
      $region36: #{bert_forward.22} parent=31 // pred_fallthru
        _
    $region32: #{bert_forward.22} parent=5 // pred_fallthru
      _
    %p213 = scmp.le.s32.totalorder 2, %s9
    // Predicated region
    $region37: #{bert_forward.22} parent=5 // pred_check
      %p214 = pneg %p213
    $region38: #{bert_forward.22} parent=5 // pred_check_branch
      %216 = sbr.rel (%p214) target = $region40
    $region39: #{bert_forward.22} parent=5 // pred_region
      %s217 = ssub.s32 %s9, 2
      // Predicated region
      $region41: #{bert_forward.22} parent=39 // pred_check
        %p218 = pneg %p106
      $region42: #{bert_forward.22} parent=39 // pred_check_branch
        %220 = sbr.rel (%p218) target = $region44
      $region43: #{bert_forward.22} parent=39 // pred_region
        %p221 = scmp.lt.s32.totalorder %s15, 1
        %s222 = scalar_select %p221, %s15, 1
        %s223 = scalar_lea.vmem %s3, %s222
      $region44: #{bert_forward.22} parent=39 // pred_fallthru
        _
    $region40: #{bert_forward.22} parent=5 // pred_fallthru
      _
  $region6: #{bert_forward.22} parent=0 // loop_footer
    %s13 = sadd.s32 1, %s9
  $region7: #{bert_forward.22} parent=0 // loop_footer_branch
    %8 = sbr.rel target = $region3
  $region8: #{bert_forward.22} parent=0 // loop_exit
    _

// kernel: bert_forward.16
$region0: #{bert_forward.16}
  #allocation0 [shape = 'u32[]', space=smem, size = 0x4, offset = 0x4, fixed_abs, tag = 'smem constant byte address 0x4 - core index']
  #allocation1 [shape = 'u32[144,128]{1,0:T(1,128)}', space=vmem, size = 0x12000, scoped, tag = 'internal scratch']
  #allocation2 [shape = 'f32[16,32]{1,0:T(8,128)}', space=vmem, size = 0x2000, scoped, tag = 'scratch operand']
  %s0 = inlined_call_operand.vmem [shape: f32[16,128], index: 0, kind: input, shape index: {}]
  %s1 = inlined_call_operand.vmem [shape: f32[128,32], index: 1, kind: input, shape index: {}]
  %s2 = inlined_call_operand.vmem [shape: f32[1,32], index: 2, kind: input, shape index: {}]
  %s3 = inlined_call_operand.vmem [shape: f32[16,32], index: 3, kind: input, shape index: {}]
  %s4 = inlined_call_operand.vmem [shape: f32[16,32], index: 4, kind: output, shape index: {}]
  %s5 = sld [smem:[#allocation0]]
  $region34: #{bert_forward.16} parent=0
    _
  %s7 = ssub.s32 1, %s5
  %s8 = scalar_select 0, %s7, %s5
  // Predicated region
  $region2: #{bert_forward.16} parent=0 // pred_check
    _
  $region3: #{bert_forward.16} parent=0 // pred_check_branch
    %10 = sbr.rel (0) target = $region5
  $region4: #{bert_forward.16} parent=0 // pred_region
    _
  $region5: #{bert_forward.16} parent=0 // pred_fallthru
    _
  // Predicated region
  $region6: #{bert_forward.16} parent=0 // pred_check
    _
  $region7: #{bert_forward.16} parent=0 // pred_check_branch
    %12 = sbr.rel (0) target = $region9
  $region8: #{bert_forward.16} parent=0 // pred_region
    _
  $region9: #{bert_forward.16} parent=0 // pred_fallthru
    _
  // Predicated region
  $region10: #{bert_forward.16} parent=0 // pred_check
    _
  $region11: #{bert_forward.16} parent=0 // pred_check_branch
    %14 = sbr.rel (0) target = $region13
  $region12: #{bert_forward.16} parent=0 // pred_region
    _
  $region13: #{bert_forward.16} parent=0 // pred_fallthru
    _
  // Predicated region
  $region14: #{bert_forward.16} parent=0 // pred_check
    _
  $region15: #{bert_forward.16} parent=0 // pred_check_branch
    %16 = sbr.rel (0) target = $region17
  $region16: #{bert_forward.16} parent=0 // pred_region
    _
  $region17: #{bert_forward.16} parent=0 // pred_fallthru
    _
  %p17 = scmp.eq.s32.totalorder 0, 0
  // Predicated region
  $region18: #{bert_forward.16} parent=0 // pred_check
    %p18 = pneg %p17
  $region19: #{bert_forward.16} parent=0 // pred_check_branch
    %20 = sbr.rel (%p18) target = $region21
  $region20: #{bert_forward.16} parent=0 // pred_region
    %vm21 = vcmask 261120
    %22 = vst.msk [vmem:[#allocation2] sm:$0xff] %vm21, 0.0
    %23 = vst.msk [vmem:[#allocation2 + $0x8] sm:$0xff] %vm21, 0.0
  $region21: #{bert_forward.16} parent=0 // pred_fallthru
    _
  %v24 = vld [vmem:[%s0] sm:$0xff]
  %v25 = vld [vmem:[%s0 + $0x8] sm:$0xff]
  %v26 = vld [vmem:[#allocation2] sm:$0xff]
  %v27 = vld [vmem:[#allocation2 + $0x8] sm:$0xff]
  %v28 = vld [vmem:[%s1] sm:$0xff]
  %v29 = vld [vmem:[%s1 + $0x8] sm:$0xff]
  %v30 = vld [vmem:[%s1 + $0x10] sm:$0xff]
  %v31 = vld [vmem:[%s1 + $0x18] sm:$0xff]
  %v32 = vld [vmem:[%s1 + $0x20] sm:$0xff]
  %v33 = vld [vmem:[%s1 + $0x28] sm:$0xff]
  %v34 = vld [vmem:[%s1 + $0x30] sm:$0xff]
  %v35 = vld [vmem:[%s1 + $0x38] sm:$0xff]
  %v36 = vld [vmem:[%s1 + $0x40] sm:$0xff]
  %v37 = vld [vmem:[%s1 + $0x48] sm:$0xff]
  %v38 = vld [vmem:[%s1 + $0x50] sm:$0xff]
  %v39 = vld [vmem:[%s1 + $0x58] sm:$0xff]
  %v40 = vld [vmem:[%s1 + $0x60] sm:$0xff]
  %v41 = vld [vmem:[%s1 + $0x68] sm:$0xff]
  %v42 = vld [vmem:[%s1 + $0x70] sm:$0xff]
  %v43 = vld [vmem:[%s1 + $0x78] sm:$0xff]
  %44 = vmatprep.subr.mxu0 0.0
  %45 = vmatpush1.msra.mxu0 %v28
  %46 = vmatprep.subr.mxu0 0.0
  %47 = vmatpush1.msra.mxu0 %v29
  %48 = vmatprep.subr.mxu0 0.0
  %49 = vmatpush1.msra.mxu0 %v30
  %50 = vmatprep.subr.mxu0 0.0
  %51 = vmatpush1.msra.mxu0 %v31
  %52 = vmatprep.subr.mxu0 0.0
  %53 = vmatpush1.msra.mxu0 %v32
  %54 = vmatprep.subr.mxu0 0.0
  %55 = vmatpush1.msra.mxu0 %v33
  %56 = vmatprep.subr.mxu0 0.0
  %57 = vmatpush1.msra.mxu0 %v34
  %58 = vmatprep.subr.mxu0 0.0
  %59 = vmatpush1.msra.mxu0 %v35
  %60 = vmatprep.subr.mxu0 0.0
  %61 = vmatpush1.msra.mxu0 %v36
  %62 = vmatprep.subr.mxu0 0.0
  %63 = vmatpush1.msra.mxu0 %v37
  %64 = vmatprep.subr.mxu0 0.0
  %65 = vmatpush1.msra.mxu0 %v38
  %66 = vmatprep.subr.mxu0 0.0
  %67 = vmatpush1.msra.mxu0 %v39
  %68 = vmatprep.subr.mxu0 0.0
  %69 = vmatpush1.msra.mxu0 %v40
  %70 = vmatprep.subr.mxu0 0.0
  %71 = vmatpush1.msra.mxu0 %v41
  %72 = vmatprep.subr.mxu0 0.0
  %73 = vmatpush1.msra.mxu0 %v42
  %74 = vmatprep.subr.mxu0 0.0
  %75 = vmatpush1.msra.mxu0 %v43
  %76 = vmatprep.subr.mxu0 0.0
  %77 = vmatpush1.msra.mxu0 0.0
  %78 = vmatprep.subr.mxu0 0.0
  %79 = vmatpush1.msra.mxu0 0.0
  %80 = vmatprep.subr.mxu0 0.0
  %81 = vmatpush1.msra.mxu0 0.0
  %82 = vmatprep.subr.mxu0 0.0
  %83 = vmatpush1.msra.mxu0 0.0
  %84 = vmatprep.subr.mxu0 0.0
  %85 = vmatpush1.msra.mxu0 0.0
  %86 = vmatprep.subr.mxu0 0.0
  %87 = vmatpush1.msra.mxu0 0.0
  %88 = vmatprep.subr.mxu0 0.0
  %89 = vmatpush1.msra.mxu0 0.0
  %90 = vmatprep.subr.mxu0 0.0
  %91 = vmatpush1.msra.mxu0 0.0
  %92 = vmatprep.subr.mxu0 0.0
  %93 = vmatpush1.msra.mxu0 0.0
  %94 = vmatprep.subr.mxu0 0.0
  %95 = vmatpush1.msra.mxu0 0.0
  %96 = vmatprep.subr.mxu0 0.0
  %97 = vmatpush1.msra.mxu0 0.0
  %98 = vmatprep.subr.mxu0 0.0
  %99 = vmatpush1.msra.mxu0 0.0
  %100 = vmatprep.subr.mxu0 0.0
  %101 = vmatpush1.msra.mxu0 0.0
  %102 = vmatprep.subr.mxu0 0.0
  %103 = vmatpush1.msra.mxu0 0.0
  %104 = vmatprep.subr.mxu0 0.0
  %105 = vmatpush1.msra.mxu0 0.0
  %106 = vmatprep.subr.mxu0 0.0
  %107 = vmatpush1.msra.mxu0 0.0
  %108 = vmatprep.mubr.f32.mxu0 0.0
  %109 = vmatmul.mubr.f32.gmra.mrb[0].mxu0 %v24
  %v110 = vpop.f32.mrb[0].mxu0
  %v111 = vadd.f32 0.0, %v110
  %v112 = vpop.f32.mrb[0].mxu0
  %113 = vmatprep.mubr.f32.mxu0 0.0
  %114 = vmatmul.mubr.f32.gmra.mrb[0].mxu0 %v25
  %v115 = vpop.f32.mrb[0].mxu0
  %v116 = vadd.f32 0.0, %v115
  %v117 = vpop.f32.mrb[0].mxu0
  %118 = vdwg.mxu0
  %v119 = vadd.f32 %v26, %v111
  %v120 = vadd.f32 %v27, %v116
  %vm121 = vcmask 261120
  %122 = vst.msk [vmem:[#allocation2] sm:$0xff] %vm121, %v119
  %123 = vst.msk [vmem:[#allocation2 + $0x8] sm:$0xff] %vm121, %v120
  // Predicated region
  $region22: #{bert_forward.16} parent=0 // pred_check
    %p124 = pneg %p17
  $region23: #{bert_forward.16} parent=0 // pred_check_branch
    %126 = sbr.rel (%p124) target = $region25
  $region24: #{bert_forward.16} parent=0 // pred_region
    %v127 = vld [vmem:[#allocation2] sm:$0xff]
    %v128 = vld [vmem:[#allocation2 + $0x8] sm:$0xff]
    %v129 = vld [vmem:[%s2] sm:$0x1]
    %v131 = vlaneseq
    %v132 = vshrl.u32 %v131, 7
    %v133 = vsub.s32 0, %v132
    %v134 = vrot.slane %v129, %v133
    %v136 = vadd.f32 %v127, %v134
    %v137 = vadd.f32 %v128, %v134
    %v138 = vld [vmem:[%s3] sm:$0xff]
    %v139 = vld [vmem:[%s3 + $0x8] sm:$0xff]
    %v140 = vadd.f32 %v136, %v138
    %v141 = vadd.f32 %v137, %v139
    %142 = vst.msk [vmem:[%s4] sm:$0xff] %vm121, %v140
    %143 = vst.msk [vmem:[%s4 + $0x8] sm:$0xff] %vm121, %v141
  $region25: #{bert_forward.16} parent=0 // pred_fallthru
    _
  // Predicated region
  $region26: #{bert_forward.16} parent=0 // pred_check
    _
  $region27: #{bert_forward.16} parent=0 // pred_check_branch
    %145 = sbr.rel (0) target = $region29
  $region28: #{bert_forward.16} parent=0 // pred_region
    _
  $region29: #{bert_forward.16} parent=0 // pred_fallthru
    _
  // Predicated region
  $region30: #{bert_forward.16} parent=0 // pred_check
    _
  $region31: #{bert_forward.16} parent=0 // pred_check_branch
    %147 = sbr.rel (0) target = $region33
  $region32: #{bert_forward.16} parent=0 // pred_region
    _
  $region33: #{bert_forward.16} parent=0 // pred_fallthru
    _

// kernel: bert_forward.23
$region0: #{bert_forward.23}
  #allocation0 [shape = 'u32[]', space=smem, size = 0x4, offset = 0x4, fixed_abs, tag = 'smem constant byte address 0x4 - core index']
  #allocation1 [shape = 'u32[144,128]{1,0:T(1,128)}', space=vmem, size = 0x12000, scoped, tag = 'internal scratch']
  #allocation2 [shape = 'f32[2,64]{1,0:T(2,128)}', space=vmem, size = 0x400, scoped, tag = 'scratch operand']
  %s0 = inlined_call_operand.vmem [shape: f32[2,32], index: 0, kind: input, shape index: {}]
  %s1 = inlined_call_operand.vmem [shape: f32[32,64], index: 1, kind: input, shape index: {}]
  %s2 = inlined_call_operand.vmem [shape: f32[1,64], index: 2, kind: input, shape index: {}]
  %s3 = inlined_call_operand.hbm [shape: f32[2,64], index: 3, kind: output, shape index: {}]
  %s4 = sld [smem:[#allocation0]]
  $region30: #{bert_forward.23} parent=0
    _
  %s6 = ssub.s32 1, %s4
  %s7 = scalar_select 0, %s6, %s4
  $region1: #{bert_forward.23} parent=0
    #allocation3 [shape = 'u8[1024]{0}', space=vmem, size = 0x400, scoped, tag = 'output window, operand 0, single buffered']
    #allocation4 [shape = 's32[1]{0}', space=sflag, size = 0x4, scoped, tag = 'scoped memory for bert_forward.23']
    %8 = vsyncpa [#allocation4], 0
    // Predicated region
    $region2: #{bert_forward.23} parent=1 // pred_check
      _
    $region3: #{bert_forward.23} parent=1 // pred_check_branch
      %10 = sbr.rel (0) target = $region5
    $region4: #{bert_forward.23} parent=1 // pred_region
      _
    $region5: #{bert_forward.23} parent=1 // pred_fallthru
      _
    // Predicated region
    $region6: #{bert_forward.23} parent=1 // pred_check
      _
    $region7: #{bert_forward.23} parent=1 // pred_check_branch
      %12 = sbr.rel (0) target = $region9
    $region8: #{bert_forward.23} parent=1 // pred_region
      _
    $region9: #{bert_forward.23} parent=1 // pred_fallthru
      _
    // Predicated region
    $region10: #{bert_forward.23} parent=1 // pred_check
      _
    $region11: #{bert_forward.23} parent=1 // pred_check_branch
      %14 = sbr.rel (0) target = $region13
    $region12: #{bert_forward.23} parent=1 // pred_region
      _
    $region13: #{bert_forward.23} parent=1 // pred_fallthru
      _
    %p15 = scmp.eq.s32.totalorder 0, 0
    // Predicated region
    $region14: #{bert_forward.23} parent=1 // pred_check
      %p16 = pneg %p15
    $region15: #{bert_forward.23} parent=1 // pred_check_branch
      %18 = sbr.rel (%p16) target = $region17
    $region16: #{bert_forward.23} parent=1 // pred_region
      %vm19 = vcmask 517120
      %20 = vst.msk [vmem:[#allocation2] sm:$0x3] %vm19, 0.0
    $region17: #{bert_forward.23} parent=1 // pred_fallthru
      _
    %v21 = vld [vmem:[%s0] sm:$0x3]
    %v22 = vld [vmem:[#allocation2] sm:$0x3]
    %v23 = vld [vmem:[%s1] sm:$0xff]
    %v24 = vld [vmem:[%s1 + $0x8] sm:$0xff]
    %v25 = vld [vmem:[%s1 + $0x10] sm:$0xff]
    %v26 = vld [vmem:[%s1 + $0x18] sm:$0xff]
    %vm27 = vcmask 261120
    %v29 = vsel %vm27, %v21, 0
    %31 = vmatprep.subr.mxu0 0.0
    %32 = vmatpush1.msra.mxu0 %v23
    %33 = vmatprep.subr.mxu0 0.0
    %34 = vmatpush1.msra.mxu0 %v24
    %35 = vmatprep.subr.mxu0 0.0
    %36 = vmatpush1.msra.mxu0 %v25
    %37 = vmatprep.subr.mxu0 0.0
    %38 = vmatpush1.msra.mxu0 %v26
    %39 = vmatprep.subr.mxu0 0.0
    %40 = vmatpush1.msra.mxu0 0.0
    %41 = vmatprep.subr.mxu0 0.0
    %42 = vmatpush1.msra.mxu0 0.0
    %43 = vmatprep.subr.mxu0 0.0
    %44 = vmatpush1.msra.mxu0 0.0
    %45 = vmatprep.subr.mxu0 0.0
    %46 = vmatpush1.msra.mxu0 0.0
    %47 = vmatprep.subr.mxu0 0.0
    %48 = vmatpush1.msra.mxu0 0.0
    %49 = vmatprep.subr.mxu0 0.0
    %50 = vmatpush1.msra.mxu0 0.0
    %51 = vmatprep.subr.mxu0 0.0
    %52 = vmatpush1.msra.mxu0 0.0
    %53 = vmatprep.subr.mxu0 0.0
    %54 = vmatpush1.msra.mxu0 0.0
    %55 = vmatprep.subr.mxu0 0.0
    %56 = vmatpush1.msra.mxu0 0.0
    %57 = vmatprep.subr.mxu0 0.0
    %58 = vmatpush1.msra.mxu0 0.0
    %59 = vmatprep.subr.mxu0 0.0
    %60 = vmatpush1.msra.mxu0 0.0
    %61 = vmatprep.subr.mxu0 0.0
    %62 = vmatpush1.msra.mxu0 0.0
    %63 = vmatprep.subr.mxu0 0.0
    %64 = vmatpush1.msra.mxu0 0.0
    %65 = vmatprep.subr.mxu0 0.0
    %66 = vmatpush1.msra.mxu0 0.0
    %67 = vmatprep.subr.mxu0 0.0
    %68 = vmatpush1.msra.mxu0 0.0
    %69 = vmatprep.subr.mxu0 0.0
    %70 = vmatpush1.msra.mxu0 0.0
    %71 = vmatprep.subr.mxu0 0.0
    %72 = vmatpush1.msra.mxu0 0.0
    %73 = vmatprep.subr.mxu0 0.0
    %74 = vmatpush1.msra.mxu0 0.0
    %75 = vmatprep.subr.mxu0 0.0
    %76 = vmatpush1.msra.mxu0 0.0
    %77 = vmatprep.subr.mxu0 0.0
    %78 = vmatpush1.msra.mxu0 0.0
    %79 = vmatprep.subr.mxu0 0.0
    %80 = vmatpush1.msra.mxu0 0.0
    %81 = vmatprep.subr.mxu0 0.0
    %82 = vmatpush1.msra.mxu0 0.0
    %83 = vmatprep.subr.mxu0 0.0
    %84 = vmatpush1.msra.mxu0 0.0
    %85 = vmatprep.subr.mxu0 0.0
    %86 = vmatpush1.msra.mxu0 0.0
    %87 = vmatprep.subr.mxu0 0.0
    %88 = vmatpush1.msra.mxu0 0.0
    %89 = vmatprep.subr.mxu0 0.0
    %90 = vmatpush1.msra.mxu0 0.0
    %91 = vmatprep.subr.mxu0 0.0
    %92 = vmatpush1.msra.mxu0 0.0
    %93 = vmatprep.subr.mxu0 0.0
    %94 = vmatpush1.msra.mxu0 0.0
    %95 = vmatprep.mubr.f32.mxu0 0.0
    %96 = vmatmul.mubr.f32.gmra.mrb[0].mxu0 %v29
    %v97 = vpop.f32.mrb[0].mxu0
    %v98 = vadd.f32 0.0, %v97
    %v99 = vpop.f32.mrb[0].mxu0
    %100 = vdwg.mxu0
    %v101 = vadd.f32 %v22, %v98
    %vm102 = vcmask 517120
    %103 = vst.msk [vmem:[#allocation2] sm:$0x3] %vm102, %v101
    // Predicated region
    $region18: #{bert_forward.23} parent=1 // pred_check
      %p104 = pneg %p15
    $region19: #{bert_forward.23} parent=1 // pred_check_branch
      %106 = sbr.rel (%p104) target = $region21
    $region20: #{bert_forward.23} parent=1 // pred_region
      %v107 = vld [vmem:[#allocation2] sm:$0x3]
      %v108 = vld [vmem:[%s2] sm:$0x1]
      %v110 = vlaneseq
      %v111 = vshrl.u32 %v110, 7
      %v112 = vsub.s32 0, %v111
      %v113 = vrot.slane %v108, %v112
      %v115 = vadd.f32 %v107, %v113
      %116 = vst.msk [vmem:[#allocation3] sm:$0x3] %vm102, %v115
    $region21: #{bert_forward.23} parent=1 // pred_fallthru
      _
    // Predicated region
    $region22: #{bert_forward.23} parent=1 // pred_check
      _
    $region23: #{bert_forward.23} parent=1 // pred_check_branch
      %118 = sbr.rel (0) target = $region25
    $region24: #{bert_forward.23} parent=1 // pred_region
      %s120 = ssub.s32 32, 32
      %121 = vsyncadd [#allocation4], %s120
      %s123 = sshll.u32 [#allocation3], 4
      %s124 = int_to_ptr.vmem [resolvable:$true] %s123
      %126 = dma.vmem_to_hbm [thread:$0]  %s124, 32, %s3, [#allocation4]
    $region25: #{bert_forward.23} parent=1 // pred_fallthru
      _
    // Predicated region
    $region26: #{bert_forward.23} parent=1 // pred_check
      _
    $region27: #{bert_forward.23} parent=1 // pred_check_branch
      %128 = sbr.rel (0) target = $region29
    $region28: #{bert_forward.23} parent=1 // pred_region
      %129 = dma.done [#allocation4], 32
    $region29: #{bert_forward.23} parent=1 // pred_fallthru
      _
    %130 = vsyncpa [#allocation4], 1

</llo_original>
